<compile_context>
chip_gen: v6e
topology: v6e:2x2x1
jax: 0.10.0
libtpu: 0.0.40
codegen_flags: <defaults>
</compile_context>

<pallas_src>
import jax
import jax.numpy as jnp
from jax.experimental import pallas as pl
from jax.experimental.pallas import tpu as pltpu

NUM_EMBEDDING = 64
NUM_HEAD = 4
HEAD_SIZE = NUM_EMBEDDING // NUM_HEAD     # 16
BLOCK_SIZE = 32                           # max sequence length (tril buffer)
LN_EPS = 1e-5                             # torch.nn.LayerNorm default
NEG_BIG = -1e30                           # finite "minus infinity" for masking


def _layernorm(x, gamma, beta):
    mu = jnp.mean(x, axis=-1, keepdims=True)
    var = jnp.mean((x - mu) ** 2, axis=-1, keepdims=True)
    xn = (x - mu) * jax.lax.rsqrt(var + LN_EPS)
    return xn * gamma + beta


def block_kernel(x_ref,
                 ln1_g_ref, ln1_b_ref,
                 wq_ref, wk_ref, wv_ref,
                 wproj_ref, bproj_ref,
                 ln2_g_ref, ln2_b_ref,
                 w1_ref, b1_ref, w2_ref, b2_ref,
                 out_ref):
    x3 = x_ref[...]                            # (BT, T, C) float32
    BT, T, C = x3.shape
    M = BT * T
    x = x3.reshape(M, C)                       # flatten batch tile for dense layers

    # ---------------- sub-layer 1: x + MHSA(LN1(x)) ----------------
    xn = _layernorm(x, ln1_g_ref[...], ln1_b_ref[...])

    # NOTE: reference scales scores by C ** -0.5 (num_embedding, not head_size);
    # fold it into q once (one (M, C) VPU multiply instead of NUM_HEAD (T, T) ones).
    scale = C ** (-0.5)
    q = jnp.dot(xn, wq_ref[...], preferred_element_type=jnp.float32) * scale
    k = jnp.dot(xn, wk_ref[...], preferred_element_type=jnp.float32)
    v = jnp.dot(xn, wv_ref[...], preferred_element_type=jnp.float32)

    q3 = q.reshape(BT, T, C)
    k3 = k.reshape(BT, T, C)
    v3 = v.reshape(BT, T, C)

    # Causal additive bias (tril[:T, :T]); built once per grid step, shared by
    # all heads and all batch rows in the tile.  Finite negative avoids
    # -inf/NaN corner cases in the max-subtract path.
    row = jax.lax.broadcasted_iota(jnp.int32, (T, T), 0)
    col = jax.lax.broadcasted_iota(jnp.int32, (T, T), 1)
    mask_bias = jnp.where(col <= row, 0.0, NEG_BIG).astype(jnp.float32)

    wproj = wproj_ref[...]                     # (C, C), loaded once

    # Multi-head attention with the output projection folded into the head
    # loop:  concat(heads) @ Wproj == sum_h head_h @ Wproj[h*D:(h+1)*D, :].
    sa = jnp.zeros((M, C), jnp.float32)
    for h in range(NUM_HEAD):                  # static unrolled loop over heads
        sl = slice(h * HEAD_SIZE, (h + 1) * HEAD_SIZE)
        qh, kh, vh = q3[:, :, sl], k3[:, :, sl], v3[:, :, sl]

        s = jnp.einsum('btd,bsd->bts', qh, kh,
                       preferred_element_type=jnp.float32)     # (BT, T, T)
        s = s + mask_bias[None, :, :]
        s = s - jnp.max(s, axis=-1, keepdims=True)
        p = jnp.exp(s)
        inv_l = pl.reciprocal(jnp.sum(p, axis=-1, keepdims=True), approx=True)
        p = p * inv_l

        oh = jnp.einsum('bts,bsd->btd', p, vh,
                        preferred_element_type=jnp.float32)    # (BT, T, D)
        sa = sa + jnp.dot(oh.reshape(M, HEAD_SIZE), wproj[sl, :],
                          preferred_element_type=jnp.float32)  # (M, C)

    x1 = x + sa + bproj_ref[...]

    # ---------------- sub-layer 2: x + FFN(LN2(x)) ----------------
    xn2 = _layernorm(x1, ln2_g_ref[...], ln2_b_ref[...])
    h1 = jnp.dot(xn2, w1_ref[...],
                 preferred_element_type=jnp.float32) + b1_ref[...]
    h1 = jnp.maximum(h1, 0.0)                                  # ReLU
    ff = jnp.dot(h1, w2_ref[...],
                 preferred_element_type=jnp.float32) + b2_ref[...]

    out_ref[...] = (x1 + ff).reshape(BT, T, C)


def _choose_batch_tile(B, T):
    # Target ~256 rows per grid step so MXU matmuls have M >= 128.
    return max(1, min(B, 256 // T))


def transformer_block(x, params, *, batch_tile=None):
    B, T, C = x.shape
    assert C == NUM_EMBEDDING and T <= BLOCK_SIZE

    if batch_tile is None:
        batch_tile = _choose_batch_tile(B, T)
    grid_b = pl.cdiv(B, batch_tile)
    B_pad = grid_b * batch_tile
    if B_pad != B:
        # Pad the batch so every grid step sees a full, well-defined tile.
        x = jnp.pad(x, ((0, B_pad - B), (0, 0), (0, 0)))

    def full_spec(shape):
        nd = len(shape)
        # Constant index map => block is DMA'd once and stays VMEM-resident
        # across grid steps (weights/biases, ~200 KiB total).
        return pl.BlockSpec(shape, lambda b, _nd=nd: (0,) * _nd)

    in_specs = [
        pl.BlockSpec((batch_tile, T, C), lambda b: (b, 0, 0)),     # x
        full_spec((1, C)), full_spec((1, C)),                      # ln1 g/b
        full_spec((C, C)), full_spec((C, C)), full_spec((C, C)),   # Wq Wk Wv
        full_spec((C, C)), full_spec((1, C)),                      # Wproj, bproj
        full_spec((1, C)), full_spec((1, C)),                      # ln2 g/b
        full_spec((C, 4 * C)), full_spec((1, 4 * C)),              # W1, b1
        full_spec((4 * C, C)), full_spec((1, C)),                  # W2, b2
    ]

    out = pl.pallas_call(
        block_kernel,
        out_shape=jax.ShapeDtypeStruct((B_pad, T, C), jnp.float32),
        grid_spec=pltpu.PrefetchScalarGridSpec(
            num_scalar_prefetch=0,
            grid=(grid_b,),
            in_specs=in_specs,
            out_specs=pl.BlockSpec((batch_tile, T, C), lambda b: (b, 0, 0)),
        ),
        compiler_params=pltpu.CompilerParams(
            dimension_semantics=("parallel",)),   # megacore-shard batch tiles
    )(x,
      params["ln1_g"], params["ln1_b"],
      params["wq"], params["wk"], params["wv"],
      params["wproj"], params["bproj"],
      params["ln2_g"], params["ln2_b"],
      params["w1"], params["b1"], params["w2"], params["b2"])

    return out[:B] if B_pad != B else out


def init_params(key):
    """Deterministic synthetic weights. Linear weights stored as (in, out)."""
    C = NUM_EMBEDDING
    ks = jax.random.split(key, 8)
    std = 0.02
    return {
        "ln1_g": jnp.ones((1, C), jnp.float32),
        "ln1_b": jnp.zeros((1, C), jnp.float32),
        "wq": std * jax.random.normal(ks[0], (C, C), jnp.float32),
        "wk": std * jax.random.normal(ks[1], (C, C), jnp.float32),
        "wv": std * jax.random.normal(ks[2], (C, C), jnp.float32),
        "wproj": std * jax.random.normal(ks[3], (C, C), jnp.float32),
        "bproj": std * jax.random.normal(ks[4], (1, C), jnp.float32),
        "ln2_g": jnp.ones((1, C), jnp.float32),
        "ln2_b": jnp.zeros((1, C), jnp.float32),
        "w1": std * jax.random.normal(ks[5], (C, 4 * C), jnp.float32),
        "b1": jnp.zeros((1, 4 * C), jnp.float32),
        "w2": std * jax.random.normal(ks[6], (4 * C, C), jnp.float32),
        "b2": jnp.zeros((1, C), jnp.float32),
    }


def reference_block(x, p):
    """Pure-JAX reference mirroring the PyTorch forward exactly."""
    B, T, C = x.shape

    def ln(v, g, b):
        mu = jnp.mean(v, axis=-1, keepdims=True)
        var = jnp.mean((v - mu) ** 2, axis=-1, keepdims=True)
        return (v - mu) / jnp.sqrt(var + LN_EPS) * g + b

    xn = ln(x, p["ln1_g"], p["ln1_b"])
    q = xn @ p["wq"]; k = xn @ p["wk"]; v = xn @ p["wv"]
    mask = jnp.tril(jnp.ones((T, T), bool))
    outs = []
    for h in range(NUM_HEAD):
        sl = slice(h * HEAD_SIZE, (h + 1) * HEAD_SIZE)
        s = jnp.einsum("btd,bsd->bts", q[..., sl], k[..., sl]) * C ** (-0.5)
        s = jnp.where(mask, s, -jnp.inf)
        w = jax.nn.softmax(s, axis=-1)
        outs.append(jnp.einsum("bts,bsd->btd", w, v[..., sl]))
    sa = jnp.concatenate(outs, axis=-1) @ p["wproj"] + p["bproj"]
    x1 = x + sa
    xn2 = ln(x1, p["ln2_g"], p["ln2_b"])
    ff = jnp.maximum(xn2 @ p["w1"] + p["b1"], 0.0) @ p["w2"] + p["b2"]
    return x1 + ff


if __name__ == "__main__":
    key = jax.random.PRNGKey(0)
    k_x1, k_x2, k_p = jax.random.split(key, 3)
    params = init_params(k_p)

    # Tolerance is 1e-3 because softmax normalization uses the EUP's
    # approximate reciprocal (pl.reciprocal(..., approx=True)).
    ATOL = RTOL = 1e-3

    # Small case (matches the suggested tiny shapes): single grid step.
    B, T, C = 2, 8, NUM_EMBEDDING
    x = jax.random.normal(k_x1, (B, T, C), jnp.float32)
    out = jax.block_until_ready(transformer_block(x, params))
    ref = reference_block(x, params)
    assert out.shape == (B, T, C)
    assert jnp.allclose(out, ref, atol=ATOL, rtol=RTOL), "mismatch vs reference (small)"

    # Larger batch: exercises the batch-tiled grid (>= 2 steps) and batch padding.
    B2, T2 = 20, BLOCK_SIZE
    x2 = jax.random.normal(k_x2, (B2, T2, C), jnp.float32)
    out2 = jax.block_until_ready(transformer_block(x2, params))
    ref2 = reference_block(x2, params)
    assert out2.shape == (B2, T2, C)
    assert jnp.allclose(out2, ref2, atol=ATOL, rtol=RTOL), "mismatch vs reference (tiled)"

    print("KERNEL_OK")
</pallas_src>

<mosaic_0001>
module attributes {stable_mosaic.version = 11 : i64} {
  func.func @block_kernel(%arg0: i32, %arg1: memref<2x8x64xf32, #tpu.memory_space<vmem>>, %arg2: memref<1x64xf32, #tpu.memory_space<vmem>>, %arg3: memref<1x64xf32, #tpu.memory_space<vmem>>, %arg4: memref<64x64xf32, #tpu.memory_space<vmem>>, %arg5: memref<64x64xf32, #tpu.memory_space<vmem>>, %arg6: memref<64x64xf32, #tpu.memory_space<vmem>>, %arg7: memref<64x64xf32, #tpu.memory_space<vmem>>, %arg8: memref<1x64xf32, #tpu.memory_space<vmem>>, %arg9: memref<1x64xf32, #tpu.memory_space<vmem>>, %arg10: memref<1x64xf32, #tpu.memory_space<vmem>>, %arg11: memref<64x256xf32, #tpu.memory_space<vmem>>, %arg12: memref<1x256xf32, #tpu.memory_space<vmem>>, %arg13: memref<256x64xf32, #tpu.memory_space<vmem>>, %arg14: memref<1x64xf32, #tpu.memory_space<vmem>>, %arg15: memref<2x8x64xf32, #tpu.memory_space<vmem>>) attributes {dimension_semantics = [#tpu.dimension_semantics<parallel>], iteration_bounds = array<i64: 1>, scalar_prefetch = 0 : i64, scratch_operands = 0 : i64, tpu.core_type = #tpu.core_type<tc>, window_params = [{transform_indices = @transform_0, window_bounds = array<i64: 2, 8, 64>}, {pipeline_mode = #tpu.pipeline_mode<synchronous>, transform_indices = @transform_1, window_bounds = array<i64: 1, 64>}, {pipeline_mode = #tpu.pipeline_mode<synchronous>, transform_indices = @transform_2, window_bounds = array<i64: 1, 64>}, {pipeline_mode = #tpu.pipeline_mode<synchronous>, transform_indices = @transform_3, window_bounds = array<i64: 64, 64>}, {pipeline_mode = #tpu.pipeline_mode<synchronous>, transform_indices = @transform_4, window_bounds = array<i64: 64, 64>}, {pipeline_mode = #tpu.pipeline_mode<synchronous>, transform_indices = @transform_5, window_bounds = array<i64: 64, 64>}, {pipeline_mode = #tpu.pipeline_mode<synchronous>, transform_indices = @transform_6, window_bounds = array<i64: 64, 64>}, {pipeline_mode = #tpu.pipeline_mode<synchronous>, transform_indices = @transform_7, window_bounds = array<i64: 1, 64>}, {pipeline_mode = #tpu.pipeline_mode<synchronous>, transform_indices = @transform_8, window_bounds = array<i64: 1, 64>}, {pipeline_mode = #tpu.pipeline_mode<synchronous>, transform_indices = @transform_9, window_bounds = array<i64: 1, 64>}, {pipeline_mode = #tpu.pipeline_mode<synchronous>, transform_indices = @transform_10, window_bounds = array<i64: 64, 256>}, {pipeline_mode = #tpu.pipeline_mode<synchronous>, transform_indices = @transform_11, window_bounds = array<i64: 1, 256>}, {pipeline_mode = #tpu.pipeline_mode<synchronous>, transform_indices = @transform_12, window_bounds = array<i64: 256, 64>}, {pipeline_mode = #tpu.pipeline_mode<synchronous>, transform_indices = @transform_13, window_bounds = array<i64: 1, 64>}, {transform_indices = @transform_14, window_bounds = array<i64: 2, 8, 64>}]} {
    %c0 = arith.constant 0 : index
    %c0_0 = arith.constant 0 : index
    %c0_1 = arith.constant 0 : index
    %0 = vector.load %arg1[%c0, %c0_0, %c0_1] : memref<2x8x64xf32, #tpu.memory_space<vmem>>, vector<2x8x64xf32>
    %1 = vector.shape_cast %0 : vector<2x8x64xf32> to vector<16x64xf32>
    %c0_2 = arith.constant 0 : index
    %c0_3 = arith.constant 0 : index
    %2 = vector.load %arg2[%c0_2, %c0_3] : memref<1x64xf32, #tpu.memory_space<vmem>>, vector<1x64xf32>
    %c0_4 = arith.constant 0 : index
    %c0_5 = arith.constant 0 : index
    %3 = vector.load %arg3[%c0_4, %c0_5] : memref<1x64xf32, #tpu.memory_space<vmem>>, vector<1x64xf32>
    %cst = arith.constant dense<0.000000e+00> : vector<16xf32>
    %4 = vector.multi_reduction <add>, %1, %cst [1] : vector<16x64xf32> to vector<16xf32>
    %5 = vector.shape_cast %4 : vector<16xf32> to vector<16x1xf32>
    %cst_6 = arith.constant 6.400000e+01 : f32
    %6 = vector.broadcast %cst_6 : f32 to vector<16x1xf32>
    %7 = arith.divf %5, %6 : vector<16x1xf32>
    %8 = vector.broadcast %7 : vector<16x1xf32> to vector<16x64xf32>
    %9 = arith.subf %1, %8 : vector<16x64xf32>
    %10 = arith.mulf %9, %9 : vector<16x64xf32>
    %cst_7 = arith.constant dense<0.000000e+00> : vector<16xf32>
    %11 = vector.multi_reduction <add>, %10, %cst_7 [1] : vector<16x64xf32> to vector<16xf32>
    %12 = vector.shape_cast %11 : vector<16xf32> to vector<16x1xf32>
    %cst_8 = arith.constant 6.400000e+01 : f32
    %13 = vector.broadcast %cst_8 : f32 to vector<16x1xf32>
    %14 = arith.divf %12, %13 : vector<16x1xf32>
    %15 = vector.broadcast %7 : vector<16x1xf32> to vector<16x64xf32>
    %16 = arith.subf %1, %15 : vector<16x64xf32>
    %cst_9 = arith.constant 9.99999974E-6 : f32
    %17 = vector.broadcast %cst_9 : f32 to vector<16x1xf32>
    %18 = arith.addf %14, %17 : vector<16x1xf32>
    %19 = math.rsqrt %18 : vector<16x1xf32>
    %20 = vector.broadcast %19 : vector<16x1xf32> to vector<16x64xf32>
    %21 = arith.mulf %16, %20 : vector<16x64xf32>
    %22 = vector.broadcast %2 : vector<1x64xf32> to vector<16x64xf32>
    %23 = arith.mulf %21, %22 : vector<16x64xf32>
    %24 = vector.broadcast %3 : vector<1x64xf32> to vector<16x64xf32>
    %25 = arith.addf %23, %24 : vector<16x64xf32>
    %c0_10 = arith.constant 0 : index
    %c0_11 = arith.constant 0 : index
    %26 = vector.load %arg4[%c0_10, %c0_11] : memref<64x64xf32, #tpu.memory_space<vmem>>, vector<64x64xf32>
    %cst_12 = arith.constant dense<0.000000e+00> : vector<16x64xf32>
    %27 = tpu.matmul %25, %26, %cst_12 {dimension_numbers = #tpu.dot_dimension_numbers<[1], [0], [0], [1], [0, 0, 1, 1], [], []>} : vector<16x64xf32>, vector<64x64xf32>, vector<16x64xf32> -> vector<16x64xf32>
    %cst_13 = arith.constant 1.250000e-01 : f32
    %28 = vector.broadcast %cst_13 : f32 to vector<16x64xf32>
    %29 = arith.mulf %27, %28 : vector<16x64xf32>
    %c0_14 = arith.constant 0 : index
    %c0_15 = arith.constant 0 : index
    %30 = vector.load %arg5[%c0_14, %c0_15] : memref<64x64xf32, #tpu.memory_space<vmem>>, vector<64x64xf32>
    %cst_16 = arith.constant dense<0.000000e+00> : vector<16x64xf32>
    %31 = tpu.matmul %25, %30, %cst_16 {dimension_numbers = #tpu.dot_dimension_numbers<[1], [0], [0], [1], [0, 0, 1, 1], [], []>} : vector<16x64xf32>, vector<64x64xf32>, vector<16x64xf32> -> vector<16x64xf32>
    %c0_17 = arith.constant 0 : index
    %c0_18 = arith.constant 0 : index
    %32 = vector.load %arg6[%c0_17, %c0_18] : memref<64x64xf32, #tpu.memory_space<vmem>>, vector<64x64xf32>
    %cst_19 = arith.constant dense<0.000000e+00> : vector<16x64xf32>
    %33 = tpu.matmul %25, %32, %cst_19 {dimension_numbers = #tpu.dot_dimension_numbers<[1], [0], [0], [1], [0, 0, 1, 1], [], []>} : vector<16x64xf32>, vector<64x64xf32>, vector<16x64xf32> -> vector<16x64xf32>
    %34 = vector.shape_cast %29 : vector<16x64xf32> to vector<2x8x64xf32>
    %35 = vector.shape_cast %31 : vector<16x64xf32> to vector<2x8x64xf32>
    %36 = vector.shape_cast %33 : vector<16x64xf32> to vector<2x8x64xf32>
    %37 = tpu.iota {dimensions = array<i32: 0>} : vector<8x8xi32>
    %38 = tpu.iota {dimensions = array<i32: 1>} : vector<8x8xi32>
    %39 = arith.cmpi sle, %38, %37 : vector<8x8xi32>
    %cst_20 = arith.constant 0.000000e+00 : f32
    %cst_21 = arith.constant -1.000000e+30 : f32
    %40 = vector.broadcast %cst_20 : f32 to vector<8x8xf32>
    %41 = vector.broadcast %cst_21 : f32 to vector<8x8xf32>
    %42 = arith.select %39, %40, %41 : vector<8x8xi1>, vector<8x8xf32>
    %c0_22 = arith.constant 0 : index
    %c0_23 = arith.constant 0 : index
    %43 = vector.load %arg7[%c0_22, %c0_23] : memref<64x64xf32, #tpu.memory_space<vmem>>, vector<64x64xf32>
    %cst_24 = arith.constant 0.000000e+00 : f32
    %44 = vector.broadcast %cst_24 : f32 to vector<16x64xf32>
    %45 = vector.extract_strided_slice %34 {offsets = [0, 0, 0], sizes = [2, 8, 16], strides = [1, 1, 1]} : vector<2x8x64xf32> to vector<2x8x16xf32>
    %46 = vector.extract_strided_slice %35 {offsets = [0, 0, 0], sizes = [2, 8, 16], strides = [1, 1, 1]} : vector<2x8x64xf32> to vector<2x8x16xf32>
    %47 = vector.extract_strided_slice %36 {offsets = [0, 0, 0], sizes = [2, 8, 16], strides = [1, 1, 1]} : vector<2x8x64xf32> to vector<2x8x16xf32>
    "tpu.trace_start"() <{level = 10 : i32, message = "btd,bsd->bts"}> : () -> ()
    %cst_25 = arith.constant dense<0.000000e+00> : vector<2x8x8xf32>
    %48 = tpu.matmul %45, %46, %cst_25 {dimension_numbers = #tpu.dot_dimension_numbers<[2], [2], [1], [1], [0, 0, 0, 1, 1, 1], [0], [0]>} : vector<2x8x16xf32>, vector<2x8x16xf32>, vector<2x8x8xf32> -> vector<2x8x8xf32>
    "tpu.trace_stop"() : () -> ()
    %49 = vector.shape_cast %42 : vector<8x8xf32> to vector<1x8x8xf32>
    %50 = vector.broadcast %49 : vector<1x8x8xf32> to vector<2x8x8xf32>
    %51 = arith.addf %48, %50 : vector<2x8x8xf32>
    %cst_26 = arith.constant dense<0xFF800000> : vector<2x8xf32>
    %52 = vector.multi_reduction <maximumf>, %51, %cst_26 [2] : vector<2x8x8xf32> to vector<2x8xf32>
    %53 = vector.shape_cast %52 : vector<2x8xf32> to vector<2x8x1xf32>
    %54 = vector.broadcast %53 : vector<2x8x1xf32> to vector<2x8x8xf32>
    %55 = arith.subf %51, %54 : vector<2x8x8xf32>
    %56 = math.exp %55 : vector<2x8x8xf32>
    %cst_27 = arith.constant dense<0.000000e+00> : vector<2x8xf32>
    %57 = vector.multi_reduction <add>, %56, %cst_27 [2] : vector<2x8x8xf32> to vector<2x8xf32>
    %58 = vector.shape_cast %57 : vector<2x8xf32> to vector<2x8x1xf32>
    %59 = tpu.reciprocal %58 {approx = true} : vector<2x8x1xf32> -> vector<2x8x1xf32>
    %60 = vector.broadcast %59 : vector<2x8x1xf32> to vector<2x8x8xf32>
    %61 = arith.mulf %56, %60 : vector<2x8x8xf32>
    "tpu.trace_start"() <{level = 10 : i32, message = "bts,bsd->btd"}> : () -> ()
    %cst_28 = arith.constant dense<0.000000e+00> : vector<2x8x16xf32>
    %62 = tpu.matmul %61, %47, %cst_28 {dimension_numbers = #tpu.dot_dimension_numbers<[2], [1], [1], [2], [0, 0, 0, 1, 1, 2], [0], [0]>} : vector<2x8x8xf32>, vector<2x8x16xf32>, vector<2x8x16xf32> -> vector<2x8x16xf32>
    "tpu.trace_stop"() : () -> ()
    %63 = vector.shape_cast %62 : vector<2x8x16xf32> to vector<16x16xf32>
    %64 = vector.extract_strided_slice %43 {offsets = [0, 0], sizes = [16, 64], strides = [1, 1]} : vector<64x64xf32> to vector<16x64xf32>
    %cst_29 = arith.constant dense<0.000000e+00> : vector<16x64xf32>
    %65 = tpu.matmul %63, %64, %cst_29 {dimension_numbers = #tpu.dot_dimension_numbers<[1], [0], [0], [1], [0, 0, 1, 1], [], []>} : vector<16x16xf32>, vector<16x64xf32>, vector<16x64xf32> -> vector<16x64xf32>
    %66 = arith.addf %44, %65 : vector<16x64xf32>
    %67 = vector.extract_strided_slice %34 {offsets = [0, 0, 16], sizes = [2, 8, 16], strides = [1, 1, 1]} : vector<2x8x64xf32> to vector<2x8x16xf32>
    %68 = vector.extract_strided_slice %35 {offsets = [0, 0, 16], sizes = [2, 8, 16], strides = [1, 1, 1]} : vector<2x8x64xf32> to vector<2x8x16xf32>
    %69 = vector.extract_strided_slice %36 {offsets = [0, 0, 16], sizes = [2, 8, 16], strides = [1, 1, 1]} : vector<2x8x64xf32> to vector<2x8x16xf32>
    "tpu.trace_start"() <{level = 10 : i32, message = "btd,bsd->bts"}> : () -> ()
    %cst_30 = arith.constant dense<0.000000e+00> : vector<2x8x8xf32>
    %70 = tpu.matmul %67, %68, %cst_30 {dimension_numbers = #tpu.dot_dimension_numbers<[2], [2], [1], [1], [0, 0, 0, 1, 1, 1], [0], [0]>} : vector<2x8x16xf32>, vector<2x8x16xf32>, vector<2x8x8xf32> -> vector<2x8x8xf32>
    "tpu.trace_stop"() : () -> ()
    %71 = vector.shape_cast %42 : vector<8x8xf32> to vector<1x8x8xf32>
    %72 = vector.broadcast %71 : vector<1x8x8xf32> to vector<2x8x8xf32>
    %73 = arith.addf %70, %72 : vector<2x8x8xf32>
    %cst_31 = arith.constant dense<0xFF800000> : vector<2x8xf32>
    %74 = vector.multi_reduction <maximumf>, %73, %cst_31 [2] : vector<2x8x8xf32> to vector<2x8xf32>
    %75 = vector.shape_cast %74 : vector<2x8xf32> to vector<2x8x1xf32>
    %76 = vector.broadcast %75 : vector<2x8x1xf32> to vector<2x8x8xf32>
    %77 = arith.subf %73, %76 : vector<2x8x8xf32>
    %78 = math.exp %77 : vector<2x8x8xf32>
    %cst_32 = arith.constant dense<0.000000e+00> : vector<2x8xf32>
    %79 = vector.multi_reduction <add>, %78, %cst_32 [2] : vector<2x8x8xf32> to vector<2x8xf32>
    %80 = vector.shape_cast %79 : vector<2x8xf32> to vector<2x8x1xf32>
    %81 = tpu.reciprocal %80 {approx = true} : vector<2x8x1xf32> -> vector<2x8x1xf32>
    %82 = vector.broadcast %81 : vector<2x8x1xf32> to vector<2x8x8xf32>
    %83 = arith.mulf %78, %82 : vector<2x8x8xf32>
    "tpu.trace_start"() <{level = 10 : i32, message = "bts,bsd->btd"}> : () -> ()
    %cst_33 = arith.constant dense<0.000000e+00> : vector<2x8x16xf32>
    %84 = tpu.matmul %83, %69, %cst_33 {dimension_numbers = #tpu.dot_dimension_numbers<[2], [1], [1], [2], [0, 0, 0, 1, 1, 2], [0], [0]>} : vector<2x8x8xf32>, vector<2x8x16xf32>, vector<2x8x16xf32> -> vector<2x8x16xf32>
    "tpu.trace_stop"() : () -> ()
    %85 = vector.shape_cast %84 : vector<2x8x16xf32> to vector<16x16xf32>
    %86 = vector.extract_strided_slice %43 {offsets = [16, 0], sizes = [16, 64], strides = [1, 1]} : vector<64x64xf32> to vector<16x64xf32>
    %cst_34 = arith.constant dense<0.000000e+00> : vector<16x64xf32>
    %87 = tpu.matmul %85, %86, %cst_34 {dimension_numbers = #tpu.dot_dimension_numbers<[1], [0], [0], [1], [0, 0, 1, 1], [], []>} : vector<16x16xf32>, vector<16x64xf32>, vector<16x64xf32> -> vector<16x64xf32>
    %88 = arith.addf %66, %87 : vector<16x64xf32>
    %89 = vector.extract_strided_slice %34 {offsets = [0, 0, 32], sizes = [2, 8, 16], strides = [1, 1, 1]} : vector<2x8x64xf32> to vector<2x8x16xf32>
    %90 = vector.extract_strided_slice %35 {offsets = [0, 0, 32], sizes = [2, 8, 16], strides = [1, 1, 1]} : vector<2x8x64xf32> to vector<2x8x16xf32>
    %91 = vector.extract_strided_slice %36 {offsets = [0, 0, 32], sizes = [2, 8, 16], strides = [1, 1, 1]} : vector<2x8x64xf32> to vector<2x8x16xf32>
    "tpu.trace_start"() <{level = 10 : i32, message = "btd,bsd->bts"}> : () -> ()
    %cst_35 = arith.constant dense<0.000000e+00> : vector<2x8x8xf32>
    %92 = tpu.matmul %89, %90, %cst_35 {dimension_numbers = #tpu.dot_dimension_numbers<[2], [2], [1], [1], [0, 0, 0, 1, 1, 1], [0], [0]>} : vector<2x8x16xf32>, vector<2x8x16xf32>, vector<2x8x8xf32> -> vector<2x8x8xf32>
    "tpu.trace_stop"() : () -> ()
    %93 = vector.shape_cast %42 : vector<8x8xf32> to vector<1x8x8xf32>
    %94 = vector.broadcast %93 : vector<1x8x8xf32> to vector<2x8x8xf32>
    %95 = arith.addf %92, %94 : vector<2x8x8xf32>
    %cst_36 = arith.constant dense<0xFF800000> : vector<2x8xf32>
    %96 = vector.multi_reduction <maximumf>, %95, %cst_36 [2] : vector<2x8x8xf32> to vector<2x8xf32>
    %97 = vector.shape_cast %96 : vector<2x8xf32> to vector<2x8x1xf32>
    %98 = vector.broadcast %97 : vector<2x8x1xf32> to vector<2x8x8xf32>
    %99 = arith.subf %95, %98 : vector<2x8x8xf32>
    %100 = math.exp %99 : vector<2x8x8xf32>
    %cst_37 = arith.constant dense<0.000000e+00> : vector<2x8xf32>
    %101 = vector.multi_reduction <add>, %100, %cst_37 [2] : vector<2x8x8xf32> to vector<2x8xf32>
    %102 = vector.shape_cast %101 : vector<2x8xf32> to vector<2x8x1xf32>
    %103 = tpu.reciprocal %102 {approx = true} : vector<2x8x1xf32> -> vector<2x8x1xf32>
    %104 = vector.broadcast %103 : vector<2x8x1xf32> to vector<2x8x8xf32>
    %105 = arith.mulf %100, %104 : vector<2x8x8xf32>
    "tpu.trace_start"() <{level = 10 : i32, message = "bts,bsd->btd"}> : () -> ()
    %cst_38 = arith.constant dense<0.000000e+00> : vector<2x8x16xf32>
    %106 = tpu.matmul %105, %91, %cst_38 {dimension_numbers = #tpu.dot_dimension_numbers<[2], [1], [1], [2], [0, 0, 0, 1, 1, 2], [0], [0]>} : vector<2x8x8xf32>, vector<2x8x16xf32>, vector<2x8x16xf32> -> vector<2x8x16xf32>
    "tpu.trace_stop"() : () -> ()
    %107 = vector.shape_cast %106 : vector<2x8x16xf32> to vector<16x16xf32>
    %108 = vector.extract_strided_slice %43 {offsets = [32, 0], sizes = [16, 64], strides = [1, 1]} : vector<64x64xf32> to vector<16x64xf32>
    %cst_39 = arith.constant dense<0.000000e+00> : vector<16x64xf32>
    %109 = tpu.matmul %107, %108, %cst_39 {dimension_numbers = #tpu.dot_dimension_numbers<[1], [0], [0], [1], [0, 0, 1, 1], [], []>} : vector<16x16xf32>, vector<16x64xf32>, vector<16x64xf32> -> vector<16x64xf32>
    %110 = arith.addf %88, %109 : vector<16x64xf32>
    %111 = vector.extract_strided_slice %34 {offsets = [0, 0, 48], sizes = [2, 8, 16], strides = [1, 1, 1]} : vector<2x8x64xf32> to vector<2x8x16xf32>
    %112 = vector.extract_strided_slice %35 {offsets = [0, 0, 48], sizes = [2, 8, 16], strides = [1, 1, 1]} : vector<2x8x64xf32> to vector<2x8x16xf32>
    %113 = vector.extract_strided_slice %36 {offsets = [0, 0, 48], sizes = [2, 8, 16], strides = [1, 1, 1]} : vector<2x8x64xf32> to vector<2x8x16xf32>
    "tpu.trace_start"() <{level = 10 : i32, message = "btd,bsd->bts"}> : () -> ()
    %cst_40 = arith.constant dense<0.000000e+00> : vector<2x8x8xf32>
    %114 = tpu.matmul %111, %112, %cst_40 {dimension_numbers = #tpu.dot_dimension_numbers<[2], [2], [1], [1], [0, 0, 0, 1, 1, 1], [0], [0]>} : vector<2x8x16xf32>, vector<2x8x16xf32>, vector<2x8x8xf32> -> vector<2x8x8xf32>
    "tpu.trace_stop"() : () -> ()
    %115 = vector.shape_cast %42 : vector<8x8xf32> to vector<1x8x8xf32>
    %116 = vector.broadcast %115 : vector<1x8x8xf32> to vector<2x8x8xf32>
    %117 = arith.addf %114, %116 : vector<2x8x8xf32>
    %cst_41 = arith.constant dense<0xFF800000> : vector<2x8xf32>
    %118 = vector.multi_reduction <maximumf>, %117, %cst_41 [2] : vector<2x8x8xf32> to vector<2x8xf32>
    %119 = vector.shape_cast %118 : vector<2x8xf32> to vector<2x8x1xf32>
    %120 = vector.broadcast %119 : vector<2x8x1xf32> to vector<2x8x8xf32>
    %121 = arith.subf %117, %120 : vector<2x8x8xf32>
    %122 = math.exp %121 : vector<2x8x8xf32>
    %cst_42 = arith.constant dense<0.000000e+00> : vector<2x8xf32>
    %123 = vector.multi_reduction <add>, %122, %cst_42 [2] : vector<2x8x8xf32> to vector<2x8xf32>
    %124 = vector.shape_cast %123 : vector<2x8xf32> to vector<2x8x1xf32>
    %125 = tpu.reciprocal %124 {approx = true} : vector<2x8x1xf32> -> vector<2x8x1xf32>
    %126 = vector.broadcast %125 : vector<2x8x1xf32> to vector<2x8x8xf32>
    %127 = arith.mulf %122, %126 : vector<2x8x8xf32>
    "tpu.trace_start"() <{level = 10 : i32, message = "bts,bsd->btd"}> : () -> ()
    %cst_43 = arith.constant dense<0.000000e+00> : vector<2x8x16xf32>
    %128 = tpu.matmul %127, %113, %cst_43 {dimension_numbers = #tpu.dot_dimension_numbers<[2], [1], [1], [2], [0, 0, 0, 1, 1, 2], [0], [0]>} : vector<2x8x8xf32>, vector<2x8x16xf32>, vector<2x8x16xf32> -> vector<2x8x16xf32>
    "tpu.trace_stop"() : () -> ()
    %129 = vector.shape_cast %128 : vector<2x8x16xf32> to vector<16x16xf32>
    %130 = vector.extract_strided_slice %43 {offsets = [48, 0], sizes = [16, 64], strides = [1, 1]} : vector<64x64xf32> to vector<16x64xf32>
    %cst_44 = arith.constant dense<0.000000e+00> : vector<16x64xf32>
    %131 = tpu.matmul %129, %130, %cst_44 {dimension_numbers = #tpu.dot_dimension_numbers<[1], [0], [0], [1], [0, 0, 1, 1], [], []>} : vector<16x16xf32>, vector<16x64xf32>, vector<16x64xf32> -> vector<16x64xf32>
    %132 = arith.addf %110, %131 : vector<16x64xf32>
    %133 = arith.addf %1, %132 : vector<16x64xf32>
    %c0_45 = arith.constant 0 : index
    %c0_46 = arith.constant 0 : index
    %134 = vector.load %arg8[%c0_45, %c0_46] : memref<1x64xf32, #tpu.memory_space<vmem>>, vector<1x64xf32>
    %135 = vector.broadcast %134 : vector<1x64xf32> to vector<16x64xf32>
    %136 = arith.addf %133, %135 : vector<16x64xf32>
    %c0_47 = arith.constant 0 : index
    %c0_48 = arith.constant 0 : index
    %137 = vector.load %arg9[%c0_47, %c0_48] : memref<1x64xf32, #tpu.memory_space<vmem>>, vector<1x64xf32>
    %c0_49 = arith.constant 0 : index
    %c0_50 = arith.constant 0 : index
    %138 = vector.load %arg10[%c0_49, %c0_50] : memref<1x64xf32, #tpu.memory_space<vmem>>, vector<1x64xf32>
    %cst_51 = arith.constant dense<0.000000e+00> : vector<16xf32>
    %139 = vector.multi_reduction <add>, %136, %cst_51 [1] : vector<16x64xf32> to vector<16xf32>
    %140 = vector.shape_cast %139 : vector<16xf32> to vector<16x1xf32>
    %cst_52 = arith.constant 6.400000e+01 : f32
    %141 = vector.broadcast %cst_52 : f32 to vector<16x1xf32>
    %142 = arith.divf %140, %141 : vector<16x1xf32>
    %143 = vector.broadcast %142 : vector<16x1xf32> to vector<16x64xf32>
    %144 = arith.subf %136, %143 : vector<16x64xf32>
    %145 = arith.mulf %144, %144 : vector<16x64xf32>
    %cst_53 = arith.constant dense<0.000000e+00> : vector<16xf32>
    %146 = vector.multi_reduction <add>, %145, %cst_53 [1] : vector<16x64xf32> to vector<16xf32>
    %147 = vector.shape_cast %146 : vector<16xf32> to vector<16x1xf32>
    %cst_54 = arith.constant 6.400000e+01 : f32
    %148 = vector.broadcast %cst_54 : f32 to vector<16x1xf32>
    %149 = arith.divf %147, %148 : vector<16x1xf32>
    %150 = vector.broadcast %142 : vector<16x1xf32> to vector<16x64xf32>
    %151 = arith.subf %136, %150 : vector<16x64xf32>
    %cst_55 = arith.constant 9.99999974E-6 : f32
    %152 = vector.broadcast %cst_55 : f32 to vector<16x1xf32>
    %153 = arith.addf %149, %152 : vector<16x1xf32>
    %154 = math.rsqrt %153 : vector<16x1xf32>
    %155 = vector.broadcast %154 : vector<16x1xf32> to vector<16x64xf32>
    %156 = arith.mulf %151, %155 : vector<16x64xf32>
    %157 = vector.broadcast %137 : vector<1x64xf32> to vector<16x64xf32>
    %158 = arith.mulf %156, %157 : vector<16x64xf32>
    %159 = vector.broadcast %138 : vector<1x64xf32> to vector<16x64xf32>
    %160 = arith.addf %158, %159 : vector<16x64xf32>
    %c0_56 = arith.constant 0 : index
    %c0_57 = arith.constant 0 : index
    %161 = vector.load %arg11[%c0_56, %c0_57] : memref<64x256xf32, #tpu.memory_space<vmem>>, vector<64x256xf32>
    %cst_58 = arith.constant dense<0.000000e+00> : vector<16x256xf32>
    %162 = tpu.matmul %160, %161, %cst_58 {dimension_numbers = #tpu.dot_dimension_numbers<[1], [0], [0], [1], [0, 0, 1, 1], [], []>} : vector<16x64xf32>, vector<64x256xf32>, vector<16x256xf32> -> vector<16x256xf32>
    %c0_59 = arith.constant 0 : index
    %c0_60 = arith.constant 0 : index
    %163 = vector.load %arg12[%c0_59, %c0_60] : memref<1x256xf32, #tpu.memory_space<vmem>>, vector<1x256xf32>
    %164 = vector.broadcast %163 : vector<1x256xf32> to vector<16x256xf32>
    %165 = arith.addf %162, %164 : vector<16x256xf32>
    %cst_61 = arith.constant 0.000000e+00 : f32
    %166 = vector.broadcast %cst_61 : f32 to vector<16x256xf32>
    %167 = arith.maximumf %165, %166 : vector<16x256xf32>
    %c0_62 = arith.constant 0 : index
    %c0_63 = arith.constant 0 : index
    %168 = vector.load %arg13[%c0_62, %c0_63] : memref<256x64xf32, #tpu.memory_space<vmem>>, vector<256x64xf32>
    %cst_64 = arith.constant dense<0.000000e+00> : vector<16x64xf32>
    %169 = tpu.matmul %167, %168, %cst_64 {dimension_numbers = #tpu.dot_dimension_numbers<[1], [0], [0], [1], [0, 0, 1, 1], [], []>} : vector<16x256xf32>, vector<256x64xf32>, vector<16x64xf32> -> vector<16x64xf32>
    %c0_65 = arith.constant 0 : index
    %c0_66 = arith.constant 0 : index
    %170 = vector.load %arg14[%c0_65, %c0_66] : memref<1x64xf32, #tpu.memory_space<vmem>>, vector<1x64xf32>
    %171 = vector.broadcast %170 : vector<1x64xf32> to vector<16x64xf32>
    %172 = arith.addf %169, %171 : vector<16x64xf32>
    %173 = arith.addf %136, %172 : vector<16x64xf32>
    %174 = vector.shape_cast %173 : vector<16x64xf32> to vector<2x8x64xf32>
    %c0_67 = arith.constant 0 : index
    %c0_68 = arith.constant 0 : index
    %c0_69 = arith.constant 0 : index
    %175 = vector.load %arg15[%c0_67, %c0_68, %c0_69] : memref<2x8x64xf32, #tpu.memory_space<vmem>>, vector<2x8x64xf32>
    tpu.vector_store %arg15[%c0_67, %c0_68, %c0_69], %174 {strides = array<i32>} : memref<2x8x64xf32, #tpu.memory_space<vmem>>, vector<2x8x64xf32>,
    return
  }
  func.func @transform_0(%arg0: i32) -> (i32, i32, i32) {
    %c0_i32 = arith.constant 0 : i32
    %c0_i32_0 = arith.constant 0 : i32
    %c0_i32_1 = arith.constant 0 : i32
    return %arg0, %c0_i32, %c0_i32_0 : i32, i32, i32
  }
  func.func @transform_1(%arg0: i32) -> (i32, i32) {
    %c0_i32 = arith.constant 0 : i32
    %c0_i32_0 = arith.constant 0 : i32
    %c0_i32_1 = arith.constant 0 : i32
    return %c0_i32, %c0_i32_0 : i32, i32
  }
  func.func @transform_2(%arg0: i32) -> (i32, i32) {
    %c0_i32 = arith.constant 0 : i32
    %c0_i32_0 = arith.constant 0 : i32
    %c0_i32_1 = arith.constant 0 : i32
    return %c0_i32, %c0_i32_0 : i32, i32
  }
  func.func @transform_3(%arg0: i32) -> (i32, i32) {
    %c0_i32 = arith.constant 0 : i32
    %c0_i32_0 = arith.constant 0 : i32
    %c0_i32_1 = arith.constant 0 : i32
    return %c0_i32, %c0_i32_0 : i32, i32
  }
  func.func @transform_4(%arg0: i32) -> (i32, i32) {
    %c0_i32 = arith.constant 0 : i32
    %c0_i32_0 = arith.constant 0 : i32
    %c0_i32_1 = arith.constant 0 : i32
    return %c0_i32, %c0_i32_0 : i32, i32
  }
  func.func @transform_5(%arg0: i32) -> (i32, i32) {
    %c0_i32 = arith.constant 0 : i32
    %c0_i32_0 = arith.constant 0 : i32
    %c0_i32_1 = arith.constant 0 : i32
    return %c0_i32, %c0_i32_0 : i32, i32
  }
  func.func @transform_6(%arg0: i32) -> (i32, i32) {
    %c0_i32 = arith.constant 0 : i32
    %c0_i32_0 = arith.constant 0 : i32
    %c0_i32_1 = arith.constant 0 : i32
    return %c0_i32, %c0_i32_0 : i32, i32
  }
  func.func @transform_7(%arg0: i32) -> (i32, i32) {
    %c0_i32 = arith.constant 0 : i32
    %c0_i32_0 = arith.constant 0 : i32
    %c0_i32_1 = arith.constant 0 : i32
    return %c0_i32, %c0_i32_0 : i32, i32
  }
  func.func @transform_8(%arg0: i32) -> (i32, i32) {
    %c0_i32 = arith.constant 0 : i32
    %c0_i32_0 = arith.constant 0 : i32
    %c0_i32_1 = arith.constant 0 : i32
    return %c0_i32, %c0_i32_0 : i32, i32
  }
  func.func @transform_9(%arg0: i32) -> (i32, i32) {
    %c0_i32 = arith.constant 0 : i32
    %c0_i32_0 = arith.constant 0 : i32
    %c0_i32_1 = arith.constant 0 : i32
    return %c0_i32, %c0_i32_0 : i32, i32
  }
  func.func @transform_10(%arg0: i32) -> (i32, i32) {
    %c0_i32 = arith.constant 0 : i32
    %c0_i32_0 = arith.constant 0 : i32
    %c0_i32_1 = arith.constant 0 : i32
    return %c0_i32, %c0_i32_0 : i32, i32
  }
  func.func @transform_11(%arg0: i32) -> (i32, i32) {
    %c0_i32 = arith.constant 0 : i32
    %c0_i32_0 = arith.constant 0 : i32
    %c0_i32_1 = arith.constant 0 : i32
    return %c0_i32, %c0_i32_0 : i32, i32
  }
  func.func @transform_12(%arg0: i32) -> (i32, i32) {
    %c0_i32 = arith.constant 0 : i32
    %c0_i32_0 = arith.constant 0 : i32
    %c0_i32_1 = arith.constant 0 : i32
    return %c0_i32, %c0_i32_0 : i32, i32
  }
  func.func @transform_13(%arg0: i32) -> (i32, i32) {
    %c0_i32 = arith.constant 0 : i32
    %c0_i32_0 = arith.constant 0 : i32
    %c0_i32_1 = arith.constant 0 : i32
    return %c0_i32, %c0_i32_0 : i32, i32
  }
  func.func @transform_14(%arg0: i32) -> (i32, i32, i32) {
    %c0_i32 = arith.constant 0 : i32
    %c0_i32_0 = arith.constant 0 : i32
    %c0_i32_1 = arith.constant 0 : i32
    return %arg0, %c0_i32, %c0_i32_0 : i32, i32, i32
  }
}

</mosaic_0001>

<llo_original>
// kernel: tpu_custom_call.1
$region0: #{tpu_custom_call.1}
  #allocation0 [shape = 'u32[]', space=smem, size = 0x4, offset = 0x4, fixed_abs, tag = 'smem constant byte address 0x4 - core index']
  #allocation1 [shape = 'u32[144,128]{1,0:T(1,128)}', space=vmem, size = 0x12000, scoped, tag = 'internal scratch']
  %s0 = inlined_call_operand.hbm [shape: f32[2,8,64], index: 0, kind: input, shape index: {}]
  %s1 = inlined_call_operand.hbm [shape: f32[1,64], index: 1, kind: input, shape index: {}]
  %s2 = inlined_call_operand.hbm [shape: f32[1,64], index: 2, kind: input, shape index: {}]
  %s3 = inlined_call_operand.vmem [shape: f32[64,64], index: 3, kind: input, shape index: {}]
  %s4 = inlined_call_operand.vmem [shape: f32[64,64], index: 4, kind: input, shape index: {}]
  %s5 = inlined_call_operand.vmem [shape: f32[64,64], index: 5, kind: input, shape index: {}]
  %s6 = inlined_call_operand.vmem [shape: f32[64,64], index: 6, kind: input, shape index: {}]
  %s7 = inlined_call_operand.vmem [shape: f32[1,64], index: 7, kind: input, shape index: {}]
  %s8 = inlined_call_operand.vmem [shape: f32[1,64], index: 8, kind: input, shape index: {}]
  %s9 = inlined_call_operand.vmem [shape: f32[1,64], index: 9, kind: input, shape index: {}]
  %s10 = inlined_call_operand.vmem [shape: f32[64,256], index: 10, kind: input, shape index: {}]
  %s11 = inlined_call_operand.vmem [shape: f32[1,256], index: 11, kind: input, shape index: {}]
  %s12 = inlined_call_operand.vmem [shape: f32[256,64], index: 12, kind: input, shape index: {}]
  %s13 = inlined_call_operand.vmem [shape: f32[1,64], index: 13, kind: input, shape index: {}]
  %s14 = inlined_call_operand.hbm [shape: f32[2,8,64], index: 14, kind: output, shape index: {}]
  %s15 = sld [smem:[#allocation0]]
  $region78: #{tpu_custom_call.1} parent=0
    _
  %s17 = ssub.s32 1, %s15
  %s18 = scalar_select 0, %s17, %s15
  $region1: #{tpu_custom_call.1} parent=0
    #allocation2 [shape = 'u8[8192]{0}', space=vmem, size = 0x2000, scoped, tag = 'input window, operand 0, single buffered']
    #allocation3 [shape = 's32[1]{0}', space=sflag, size = 0x4, scoped, tag = 'scoped memory for tpu_custom_call.1']
    #allocation4 [shape = 's32[1]{0}', space=sflag, size = 0x4, scoped, tag = 'scoped memory for tpu_custom_call.1']
    #allocation5 [shape = 'u8[512]{0}', space=vmem, size = 0x400, scoped, tag = 'input window, operand 1, single buffered']
    #allocation6 [shape = 's32[1]{0}', space=sflag, size = 0x4, scoped, tag = 'scoped memory for tpu_custom_call.1']
    #allocation7 [shape = 'u8[512]{0}', space=vmem, size = 0x400, scoped, tag = 'input window, operand 2, single buffered']
    #allocation8 [shape = 'u8[8192]{0}', space=vmem, size = 0x2000, scoped, tag = 'output window, operand 0, single buffered']
    %19 = vsyncpa [#allocation3], 0
    %20 = vsyncpa [#allocation6], 0
    %21 = vsyncpa [#allocation4], 0
    // Predicated region
    $region2: #{tpu_custom_call.1} parent=1 // pred_check
      _
    $region3: #{tpu_custom_call.1} parent=1 // pred_check_branch
      %23 = sbr.rel (0) target = $region5
    $region4: #{tpu_custom_call.1} parent=1 // pred_region
      %s25 = ssub.s32 256, 256
      %26 = vsyncadd [#allocation3], %s25
      %s27 = sshll.u32 [#allocation2], 4
      %s28 = int_to_ptr.vmem [resolvable:$true] %s27
      %33 = dma.hbm_to_vmem [thread:$0]  %s0, 256, %s28, [#allocation3], 128, 128, 8
    $region5: #{tpu_custom_call.1} parent=1 // pred_fallthru
      _
    // Predicated region
    $region6: #{tpu_custom_call.1} parent=1 // pred_check
      _
    $region7: #{tpu_custom_call.1} parent=1 // pred_check_branch
      %35 = sbr.rel (0) target = $region9
    $region8: #{tpu_custom_call.1} parent=1 // pred_region
      %s37 = ssub.s32 16, 16
      %38 = vsyncadd [#allocation6], %s37
      %s40 = sshll.u32 [#allocation5], 4
      %s41 = int_to_ptr.vmem [resolvable:$true] %s40
      %43 = dma.hbm_to_vmem [thread:$0]  %s1, 16, %s41, [#allocation6]
    $region9: #{tpu_custom_call.1} parent=1 // pred_fallthru
      _
    // Predicated region
    $region10: #{tpu_custom_call.1} parent=1 // pred_check
      _
    $region11: #{tpu_custom_call.1} parent=1 // pred_check_branch
      %45 = sbr.rel (0) target = $region13
    $region12: #{tpu_custom_call.1} parent=1 // pred_region
      %s47 = ssub.s32 16, 16
      %48 = vsyncadd [#allocation6], %s47
      %s50 = sshll.u32 [#allocation7], 4
      %s51 = int_to_ptr.vmem [resolvable:$true] %s50
      %53 = dma.hbm_to_vmem [thread:$0]  %s2, 16, %s51, [#allocation6]
    $region13: #{tpu_custom_call.1} parent=1 // pred_fallthru
      _
    // Predicated region
    $region14: #{tpu_custom_call.1} parent=1 // pred_check
      _
    $region15: #{tpu_custom_call.1} parent=1 // pred_check_branch
      %55 = sbr.rel (0) target = $region17
    $region16: #{tpu_custom_call.1} parent=1 // pred_region
      _
    $region17: #{tpu_custom_call.1} parent=1 // pred_fallthru
      _
    // Predicated region
    $region18: #{tpu_custom_call.1} parent=1 // pred_check
      _
    $region19: #{tpu_custom_call.1} parent=1 // pred_check_branch
      %57 = sbr.rel (0) target = $region21
    $region20: #{tpu_custom_call.1} parent=1 // pred_region
      _
    $region21: #{tpu_custom_call.1} parent=1 // pred_fallthru
      _
    // Predicated region
    $region22: #{tpu_custom_call.1} parent=1 // pred_check
      _
    $region23: #{tpu_custom_call.1} parent=1 // pred_check_branch
      %59 = sbr.rel (0) target = $region25
    $region24: #{tpu_custom_call.1} parent=1 // pred_region
      _
    $region25: #{tpu_custom_call.1} parent=1 // pred_fallthru
      _
    // Predicated region
    $region26: #{tpu_custom_call.1} parent=1 // pred_check
      _
    $region27: #{tpu_custom_call.1} parent=1 // pred_check_branch
      %61 = sbr.rel (0) target = $region29
    $region28: #{tpu_custom_call.1} parent=1 // pred_region
      _
    $region29: #{tpu_custom_call.1} parent=1 // pred_fallthru
      _
    // Predicated region
    $region30: #{tpu_custom_call.1} parent=1 // pred_check
      _
    $region31: #{tpu_custom_call.1} parent=1 // pred_check_branch
      %63 = sbr.rel (0) target = $region33
    $region32: #{tpu_custom_call.1} parent=1 // pred_region
      _
    $region33: #{tpu_custom_call.1} parent=1 // pred_fallthru
      _
    // Predicated region
    $region34: #{tpu_custom_call.1} parent=1 // pred_check
      _
    $region35: #{tpu_custom_call.1} parent=1 // pred_check_branch
      %65 = sbr.rel (0) target = $region37
    $region36: #{tpu_custom_call.1} parent=1 // pred_region
      _
    $region37: #{tpu_custom_call.1} parent=1 // pred_fallthru
      _
    // Predicated region
    $region38: #{tpu_custom_call.1} parent=1 // pred_check
      _
    $region39: #{tpu_custom_call.1} parent=1 // pred_check_branch
      %67 = sbr.rel (0) target = $region41
    $region40: #{tpu_custom_call.1} parent=1 // pred_region
      _
    $region41: #{tpu_custom_call.1} parent=1 // pred_fallthru
      _
    // Predicated region
    $region42: #{tpu_custom_call.1} parent=1 // pred_check
      _
    $region43: #{tpu_custom_call.1} parent=1 // pred_check_branch
      %69 = sbr.rel (0) target = $region45
    $region44: #{tpu_custom_call.1} parent=1 // pred_region
      _
    $region45: #{tpu_custom_call.1} parent=1 // pred_fallthru
      _
    // Predicated region
    $region46: #{tpu_custom_call.1} parent=1 // pred_check
      _
    $region47: #{tpu_custom_call.1} parent=1 // pred_check_branch
      %71 = sbr.rel (0) target = $region49
    $region48: #{tpu_custom_call.1} parent=1 // pred_region
      _
    $region49: #{tpu_custom_call.1} parent=1 // pred_fallthru
      _
    // Predicated region
    $region50: #{tpu_custom_call.1} parent=1 // pred_check
      _
    $region51: #{tpu_custom_call.1} parent=1 // pred_check_branch
      %73 = sbr.rel (0) target = $region53
    $region52: #{tpu_custom_call.1} parent=1 // pred_region
      _
    $region53: #{tpu_custom_call.1} parent=1 // pred_fallthru
      _
    // Predicated region
    $region54: #{tpu_custom_call.1} parent=1 // pred_check
      _
    $region55: #{tpu_custom_call.1} parent=1 // pred_check_branch
      %75 = sbr.rel (0) target = $region57
    $region56: #{tpu_custom_call.1} parent=1 // pred_region
      _
    $region57: #{tpu_custom_call.1} parent=1 // pred_fallthru
      _
    // Predicated region
    $region58: #{tpu_custom_call.1} parent=1 // pred_check
      _
    $region59: #{tpu_custom_call.1} parent=1 // pred_check_branch
      %77 = sbr.rel (0) target = $region61
    $region60: #{tpu_custom_call.1} parent=1 // pred_region
      %78 = dma.done [#allocation3], 256
    $region61: #{tpu_custom_call.1} parent=1 // pred_fallthru
      _
    // Predicated region
    $region62: #{tpu_custom_call.1} parent=1 // pred_check
      _
    $region63: #{tpu_custom_call.1} parent=1 // pred_check_branch
      %80 = sbr.rel (0) target = $region65
    $region64: #{tpu_custom_call.1} parent=1 // pred_region
      %81 = dma.done [#allocation6], 16
    $region65: #{tpu_custom_call.1} parent=1 // pred_fallthru
      _
    // Predicated region
    $region66: #{tpu_custom_call.1} parent=1 // pred_check
      _
    $region67: #{tpu_custom_call.1} parent=1 // pred_check_branch
      %83 = sbr.rel (0) target = $region69
    $region68: #{tpu_custom_call.1} parent=1 // pred_region
      %84 = dma.done [#allocation6], 16
    $region69: #{tpu_custom_call.1} parent=1 // pred_fallthru
      _
    %v85 = vld [vmem:[#allocation2] sm:$0xff]
    %v86 = vld [vmem:[#allocation2 + $0x8] sm:$0xff]
    %v87 = vld [vmem:[#allocation5] sm:$0x1]
    %v88 = vld [vmem:[#allocation7] sm:$0x1]
    %vm89 = vcmask 523264
    %v90 = vsel %vm89, %v85, 0.0
    %91 = vadd.xlane.f32.xlu0 %v90
    %v92 = vpop.xlane.xlu0 %91
    %v93 = vsel %vm89, %v86, 0.0
    %94 = vadd.xlane.f32.xlu0 %v93
    %v95 = vpop.xlane.xlu0 %94
    %v96 = vrcp.pop 64.0
    %v97 = vmul.f32 %v92, %v96
    %v98 = vmul.f32 %v95, %v96
    %v99 = vsub.f32 %v85, %v97
    %v100 = vsub.f32 %v86, %v98
    %v101 = vmul.f32 %v99, %v99
    %v102 = vmul.f32 %v100, %v100
    %v103 = vsel %vm89, %v101, 0.0
    %104 = vadd.xlane.f32.xlu0 %v103
    %v105 = vpop.xlane.xlu0 %104
    %v106 = vsel %vm89, %v102, 0.0
    %107 = vadd.xlane.f32.xlu0 %v106
    %v108 = vpop.xlane.xlu0 %107
    %v109 = vmul.f32 %v105, %v96
    %v110 = vmul.f32 %v108, %v96
    %v111 = vadd.f32 %v109, 1e-05
    %v112 = vadd.f32 %v110, 1e-05
    %v113 = vrsqrt.pop %v111
    %v114 = vrsqrt.pop %v112
    %v115 = vmul.f32 %v99, %v113
    %v116 = vmul.f32 %v100, %v114
    %v118 = vlaneseq
    %v119 = vshrl.u32 %v118, 7
    %v120 = vsub.s32 0, %v119
    %v121 = vrot.slane %v87, %v120
    %v123 = vmul.f32 %v115, %v121
    %v124 = vmul.f32 %v116, %v121
    %v126 = vlaneseq
    %v127 = vshrl.u32 %v126, 7
    %v128 = vsub.s32 0, %v127
    %v129 = vrot.slane %v88, %v128
    %v131 = vadd.f32 %v123, %v129
    %v132 = vadd.f32 %v124, %v129
    %v133 = vld [vmem:[%s3] sm:$0xff]
    %v134 = vld [vmem:[%s3 + $0x8] sm:$0xff]
    %v135 = vld [vmem:[%s3 + $0x10] sm:$0xff]
    %v136 = vld [vmem:[%s3 + $0x18] sm:$0xff]
    %v137 = vld [vmem:[%s3 + $0x20] sm:$0xff]
    %v138 = vld [vmem:[%s3 + $0x28] sm:$0xff]
    %v139 = vld [vmem:[%s3 + $0x30] sm:$0xff]
    %v140 = vld [vmem:[%s3 + $0x38] sm:$0xff]
    %v142 = vsel %vm89, %v131, 0
    %v145 = vsel %vm89, %v132, 0
    %147 = vmatprep.subr.mxu0 0.0
    %148 = vmatpush1.msra.mxu0 0.0
    %149 = vmatprep.subr.mxu0 0.0
    %150 = vmatpush1.msra.mxu0 0.0
    %151 = vmatprep.subr.mxu0 0.0
    %152 = vmatpush1.msra.mxu0 0.0
    %153 = vmatprep.subr.mxu0 0.0
    %154 = vmatpush1.msra.mxu0 0.0
    %155 = vmatprep.subr.mxu0 0.0
    %156 = vmatpush1.msra.mxu0 0.0
    %157 = vmatprep.subr.mxu0 0.0
    %158 = vmatpush1.msra.mxu0 0.0
    %159 = vmatprep.subr.mxu0 0.0
    %160 = vmatpush1.msra.mxu0 0.0
    %161 = vmatprep.subr.mxu0 0.0
    %162 = vmatpush1.msra.mxu0 0.0
    %163 = vmatprep.subr.mxu0 0.0
    %164 = vmatpush1.msra.mxu0 %v140
    %165 = vmatprep.subr.mxu0 0.0
    %166 = vmatpush1.msra.mxu0 %v139
    %167 = vmatprep.subr.mxu0 0.0
    %168 = vmatpush1.msra.mxu0 %v138
    %169 = vmatprep.subr.mxu0 0.0
    %170 = vmatpush1.msra.mxu0 %v137
    %171 = vmatprep.subr.mxu0 0.0
    %172 = vmatpush1.msra.mxu0 %v136
    %173 = vmatprep.subr.mxu0 0.0
    %174 = vmatpush1.msra.mxu0 %v135
    %175 = vmatprep.subr.mxu0 0.0
    %176 = vmatpush1.msra.mxu0 %v134
    %177 = vmatprep.subr.mxu0 0.0
    %178 = vmatpush1.msra.mxu0 %v133
    %179 = vmatprep.subr.mxu0 0.0
    %180 = vmatpush2.msra.mxu0 0.0
    %181 = vmatprep.subr.mxu0 0.0
    %182 = vmatpush2.msra.mxu0 0.0
    %183 = vmatprep.subr.mxu0 0.0
    %184 = vmatpush2.msra.mxu0 0.0
    %185 = vmatprep.subr.mxu0 0.0
    %186 = vmatpush2.msra.mxu0 0.0
    %187 = vmatprep.subr.mxu0 0.0
    %188 = vmatpush2.msra.mxu0 0.0
    %189 = vmatprep.subr.mxu0 0.0
    %190 = vmatpush2.msra.mxu0 0.0
    %191 = vmatprep.subr.mxu0 0.0
    %192 = vmatpush2.msra.mxu0 0.0
    %193 = vmatprep.subr.mxu0 0.0
    %194 = vmatpush2.msra.mxu0 0.0
    %195 = vmatprep.subr.mxu0 0.0
    %196 = vmatpush2.msra.mxu0 0.0
    %197 = vmatprep.subr.mxu0 0.0
    %198 = vmatpush2.msra.mxu0 0.0
    %199 = vmatprep.subr.mxu0 0.0
    %200 = vmatpush2.msra.mxu0 0.0
    %201 = vmatprep.subr.mxu0 0.0
    %202 = vmatpush2.msra.mxu0 0.0
    %203 = vmatprep.subr.mxu0 0.0
    %204 = vmatpush2.msra.mxu0 0.0
    %205 = vmatprep.subr.mxu0 0.0
    %206 = vmatpush2.msra.mxu0 0.0
    %207 = vmatprep.subr.mxu0 0.0
    %208 = vmatpush2.msra.mxu0 0.0
    %209 = vmatprep.subr.mxu0 0.0
    %210 = vmatpush2.msra.mxu0 0.0
    %211 = vmatprep.mubr.f32.mxu0 0.0
    %212 = vmatmul.mubr.f32.gmra.mxu0 %v142
    %v213 = vpop.f32.mrf.mxu0
    %v214 = vadd.f32 0.0, %v213
    %v215 = vpop.f32.mrf.mxu0
    %216 = vmatprep.mubr.f32.mxu0 0.0
    %217 = vmatmul.mubr.f32.gmra.mxu0 %v145
    %v218 = vpop.f32.mrf.mxu0
    %v219 = vadd.f32 0.0, %v218
    %v220 = vpop.f32.mrf.mxu0
    %221 = vdwg.mxu0
    %v222 = vmul.f32 %v214, 0.125
    %v223 = vmul.f32 %v219, 0.125
    %v224 = vld [vmem:[%s4] sm:$0xff]
    %v225 = vld [vmem:[%s4 + $0x8] sm:$0xff]
    %v226 = vld [vmem:[%s4 + $0x10] sm:$0xff]
    %v227 = vld [vmem:[%s4 + $0x18] sm:$0xff]
    %v228 = vld [vmem:[%s4 + $0x20] sm:$0xff]
    %v229 = vld [vmem:[%s4 + $0x28] sm:$0xff]
    %v230 = vld [vmem:[%s4 + $0x30] sm:$0xff]
    %v231 = vld [vmem:[%s4 + $0x38] sm:$0xff]
    %232 = vmatprep.subr.mxu0 0.0
    %233 = vmatpush1.msra.mxu0 0.0
    %234 = vmatprep.subr.mxu0 0.0
    %235 = vmatpush1.msra.mxu0 0.0
    %236 = vmatprep.subr.mxu0 0.0
    %237 = vmatpush1.msra.mxu0 0.0
    %238 = vmatprep.subr.mxu0 0.0
    %239 = vmatpush1.msra.mxu0 0.0
    %240 = vmatprep.subr.mxu0 0.0
    %241 = vmatpush1.msra.mxu0 0.0
    %242 = vmatprep.subr.mxu0 0.0
    %243 = vmatpush1.msra.mxu0 0.0
    %244 = vmatprep.subr.mxu0 0.0
    %245 = vmatpush1.msra.mxu0 0.0
    %246 = vmatprep.subr.mxu0 0.0
    %247 = vmatpush1.msra.mxu0 0.0
    %248 = vmatprep.subr.mxu0 0.0
    %249 = vmatpush1.msra.mxu0 %v231
    %250 = vmatprep.subr.mxu0 0.0
    %251 = vmatpush1.msra.mxu0 %v230
    %252 = vmatprep.subr.mxu0 0.0
    %253 = vmatpush1.msra.mxu0 %v229
    %254 = vmatprep.subr.mxu0 0.0
    %255 = vmatpush1.msra.mxu0 %v228
    %256 = vmatprep.subr.mxu0 0.0
    %257 = vmatpush1.msra.mxu0 %v227
    %258 = vmatprep.subr.mxu0 0.0
    %259 = vmatpush1.msra.mxu0 %v226
    %260 = vmatprep.subr.mxu0 0.0
    %261 = vmatpush1.msra.mxu0 %v225
    %262 = vmatprep.subr.mxu0 0.0
    %263 = vmatpush1.msra.mxu0 %v224
    %264 = vmatprep.subr.mxu0 0.0
    %265 = vmatpush2.msra.mxu0 0.0
    %266 = vmatprep.subr.mxu0 0.0
    %267 = vmatpush2.msra.mxu0 0.0
    %268 = vmatprep.subr.mxu0 0.0
    %269 = vmatpush2.msra.mxu0 0.0
    %270 = vmatprep.subr.mxu0 0.0
    %271 = vmatpush2.msra.mxu0 0.0
    %272 = vmatprep.subr.mxu0 0.0
    %273 = vmatpush2.msra.mxu0 0.0
    %274 = vmatprep.subr.mxu0 0.0
    %275 = vmatpush2.msra.mxu0 0.0
    %276 = vmatprep.subr.mxu0 0.0
    %277 = vmatpush2.msra.mxu0 0.0
    %278 = vmatprep.subr.mxu0 0.0
    %279 = vmatpush2.msra.mxu0 0.0
    %280 = vmatprep.subr.mxu0 0.0
    %281 = vmatpush2.msra.mxu0 0.0
    %282 = vmatprep.subr.mxu0 0.0
    %283 = vmatpush2.msra.mxu0 0.0
    %284 = vmatprep.subr.mxu0 0.0
    %285 = vmatpush2.msra.mxu0 0.0
    %286 = vmatprep.subr.mxu0 0.0
    %287 = vmatpush2.msra.mxu0 0.0
    %288 = vmatprep.subr.mxu0 0.0
    %289 = vmatpush2.msra.mxu0 0.0
    %290 = vmatprep.subr.mxu0 0.0
    %291 = vmatpush2.msra.mxu0 0.0
    %292 = vmatprep.subr.mxu0 0.0
    %293 = vmatpush2.msra.mxu0 0.0
    %294 = vmatprep.subr.mxu0 0.0
    %295 = vmatpush2.msra.mxu0 0.0
    %296 = vmatprep.mubr.f32.mxu0 0.0
    %297 = vmatmul.mubr.f32.gmra.mxu0 %v142
    %v298 = vpop.f32.mrf.mxu0
    %v299 = vadd.f32 0.0, %v298
    %v300 = vpop.f32.mrf.mxu0
    %301 = vmatprep.mubr.f32.mxu0 0.0
    %302 = vmatmul.mubr.f32.gmra.mxu0 %v145
    %v303 = vpop.f32.mrf.mxu0
    %v304 = vadd.f32 0.0, %v303
    %v305 = vpop.f32.mrf.mxu0
    %306 = vdwg.mxu0
    %v307 = vld [vmem:[%s5] sm:$0xff]
    %v308 = vld [vmem:[%s5 + $0x8] sm:$0xff]
    %v309 = vld [vmem:[%s5 + $0x10] sm:$0xff]
    %v310 = vld [vmem:[%s5 + $0x18] sm:$0xff]
    %v311 = vld [vmem:[%s5 + $0x20] sm:$0xff]
    %v312 = vld [vmem:[%s5 + $0x28] sm:$0xff]
    %v313 = vld [vmem:[%s5 + $0x30] sm:$0xff]
    %v314 = vld [vmem:[%s5 + $0x38] sm:$0xff]
    %315 = vmatprep.subr.mxu0 0.0
    %316 = vmatpush1.msra.mxu0 0.0
    %317 = vmatprep.subr.mxu0 0.0
    %318 = vmatpush1.msra.mxu0 0.0
    %319 = vmatprep.subr.mxu0 0.0
    %320 = vmatpush1.msra.mxu0 0.0
    %321 = vmatprep.subr.mxu0 0.0
    %322 = vmatpush1.msra.mxu0 0.0
    %323 = vmatprep.subr.mxu0 0.0
    %324 = vmatpush1.msra.mxu0 0.0
    %325 = vmatprep.subr.mxu0 0.0
    %326 = vmatpush1.msra.mxu0 0.0
    %327 = vmatprep.subr.mxu0 0.0
    %328 = vmatpush1.msra.mxu0 0.0
    %329 = vmatprep.subr.mxu0 0.0
    %330 = vmatpush1.msra.mxu0 0.0
    %331 = vmatprep.subr.mxu0 0.0
    %332 = vmatpush1.msra.mxu0 %v314
    %333 = vmatprep.subr.mxu0 0.0
    %334 = vmatpush1.msra.mxu0 %v313
    %335 = vmatprep.subr.mxu0 0.0
    %336 = vmatpush1.msra.mxu0 %v312
    %337 = vmatprep.subr.mxu0 0.0
    %338 = vmatpush1.msra.mxu0 %v311
    %339 = vmatprep.subr.mxu0 0.0
    %340 = vmatpush1.msra.mxu0 %v310
    %341 = vmatprep.subr.mxu0 0.0
    %342 = vmatpush1.msra.mxu0 %v309
    %343 = vmatprep.subr.mxu0 0.0
    %344 = vmatpush1.msra.mxu0 %v308
    %345 = vmatprep.subr.mxu0 0.0
    %346 = vmatpush1.msra.mxu0 %v307
    %347 = vmatprep.subr.mxu0 0.0
    %348 = vmatpush2.msra.mxu0 0.0
    %349 = vmatprep.subr.mxu0 0.0
    %350 = vmatpush2.msra.mxu0 0.0
    %351 = vmatprep.subr.mxu0 0.0
    %352 = vmatpush2.msra.mxu0 0.0
    %353 = vmatprep.subr.mxu0 0.0
    %354 = vmatpush2.msra.mxu0 0.0
    %355 = vmatprep.subr.mxu0 0.0
    %356 = vmatpush2.msra.mxu0 0.0
    %357 = vmatprep.subr.mxu0 0.0
    %358 = vmatpush2.msra.mxu0 0.0
    %359 = vmatprep.subr.mxu0 0.0
    %360 = vmatpush2.msra.mxu0 0.0
    %361 = vmatprep.subr.mxu0 0.0
    %362 = vmatpush2.msra.mxu0 0.0
    %363 = vmatprep.subr.mxu0 0.0
    %364 = vmatpush2.msra.mxu0 0.0
    %365 = vmatprep.subr.mxu0 0.0
    %366 = vmatpush2.msra.mxu0 0.0
    %367 = vmatprep.subr.mxu0 0.0
    %368 = vmatpush2.msra.mxu0 0.0
    %369 = vmatprep.subr.mxu0 0.0
    %370 = vmatpush2.msra.mxu0 0.0
    %371 = vmatprep.subr.mxu0 0.0
    %372 = vmatpush2.msra.mxu0 0.0
    %373 = vmatprep.subr.mxu0 0.0
    %374 = vmatpush2.msra.mxu0 0.0
    %375 = vmatprep.subr.mxu0 0.0
    %376 = vmatpush2.msra.mxu0 0.0
    %377 = vmatprep.subr.mxu0 0.0
    %378 = vmatpush2.msra.mxu0 0.0
    %379 = vmatprep.mubr.f32.mxu0 0.0
    %380 = vmatmul.mubr.f32.gmra.mxu0 %v142
    %v381 = vpop.f32.mrf.mxu0
    %v382 = vadd.f32 0.0, %v381
    %v383 = vpop.f32.mrf.mxu0
    %384 = vmatprep.mubr.f32.mxu0 0.0
    %385 = vmatmul.mubr.f32.gmra.mxu0 %v145
    %v386 = vpop.f32.mrf.mxu0
    %v387 = vadd.f32 0.0, %v386
    %v388 = vpop.f32.mrf.mxu0
    %389 = vdwg.mxu0
    %v390 = vlaneseq
    %v391 = vshrl.u32 %v390, 7
    %v392 = vlaneseq
    %v393 = vand.u32 %v392, 127
    %vm394 = vcmp.le.s32.totalorder %v393, %v391
    %v395 = vsel %vm394, 0.0, -1e+30
    %v396 = vld [vmem:[%s6] sm:$0xff]
    %v397 = vld [vmem:[%s6 + $0x8] sm:$0xff]
    %v398 = vld [vmem:[%s6 + $0x10] sm:$0xff]
    %v399 = vld [vmem:[%s6 + $0x18] sm:$0xff]
    %v400 = vld [vmem:[%s6 + $0x20] sm:$0xff]
    %v401 = vld [vmem:[%s6 + $0x28] sm:$0xff]
    %v402 = vld [vmem:[%s6 + $0x30] sm:$0xff]
    %v403 = vld [vmem:[%s6 + $0x38] sm:$0xff]
    %vm404 = vcmask 130048
    %v406 = vsel %vm404, %v222, 0
    %v409 = vsel %vm404, %v299, 0
    %411 = vmatprep.subr.mxu0 0.0
    %412 = vmatpush1.xpose.msra.mxu0 0.0
    %413 = vmatprep.subr.mxu0 0.0
    %414 = vmatpush1.xpose.msra.mxu0 0.0
    %415 = vmatprep.subr.mxu0 0.0
    %416 = vmatpush1.xpose.msra.mxu0 0.0
    %417 = vmatprep.subr.mxu0 0.0
    %418 = vmatpush1.xpose.msra.mxu0 0.0
    %419 = vmatprep.subr.mxu0 0.0
    %420 = vmatpush1.xpose.msra.mxu0 0.0
    %421 = vmatprep.subr.mxu0 0.0
    %422 = vmatpush1.xpose.msra.mxu0 0.0
    %423 = vmatprep.subr.mxu0 0.0
    %424 = vmatpush1.xpose.msra.mxu0 0.0
    %425 = vmatprep.subr.mxu0 0.0
    %426 = vmatpush1.xpose.msra.mxu0 0.0
    %427 = vmatprep.subr.mxu0 0.0
    %428 = vmatpush1.xpose.msra.mxu0 0.0
    %429 = vmatprep.subr.mxu0 0.0
    %430 = vmatpush1.xpose.msra.mxu0 0.0
    %431 = vmatprep.subr.mxu0 0.0
    %432 = vmatpush1.xpose.msra.mxu0 0.0
    %433 = vmatprep.subr.mxu0 0.0
    %434 = vmatpush1.xpose.msra.mxu0 0.0
    %435 = vmatprep.subr.mxu0 0.0
    %436 = vmatpush1.xpose.msra.mxu0 0.0
    %437 = vmatprep.subr.mxu0 0.0
    %438 = vmatpush1.xpose.msra.mxu0 0.0
    %439 = vmatprep.subr.mxu0 0.0
    %440 = vmatpush1.xpose.msra.mxu0 0.0
    %441 = vmatprep.subr.mxu0 0.0
    %442 = vmatpush1.xpose.msra.mxu0 %v409
    %443 = vmatprep.subr.mxu0 0.0
    %444 = vmatpush2.xpose.msra.mxu0 0.0
    %445 = vmatprep.subr.mxu0 0.0
    %446 = vmatpush2.xpose.msra.mxu0 0.0
    %447 = vmatprep.subr.mxu0 0.0
    %448 = vmatpush2.xpose.msra.mxu0 0.0
    %449 = vmatprep.subr.mxu0 0.0
    %450 = vmatpush2.xpose.msra.mxu0 0.0
    %451 = vmatprep.subr.mxu0 0.0
    %452 = vmatpush2.xpose.msra.mxu0 0.0
    %453 = vmatprep.subr.mxu0 0.0
    %454 = vmatpush2.xpose.msra.mxu0 0.0
    %455 = vmatprep.subr.mxu0 0.0
    %456 = vmatpush2.xpose.msra.mxu0 0.0
    %457 = vmatprep.subr.mxu0 0.0
    %458 = vmatpush2.xpose.msra.mxu0 0.0
    %459 = vmatprep.subr.mxu0 0.0
    %460 = vmatpush2.xpose.msra.mxu0 0.0
    %461 = vmatprep.subr.mxu0 0.0
    %462 = vmatpush2.xpose.msra.mxu0 0.0
    %463 = vmatprep.subr.mxu0 0.0
    %464 = vmatpush2.xpose.msra.mxu0 0.0
    %465 = vmatprep.subr.mxu0 0.0
    %466 = vmatpush2.xpose.msra.mxu0 0.0
    %467 = vmatprep.subr.mxu0 0.0
    %468 = vmatpush2.xpose.msra.mxu0 0.0
    %469 = vmatprep.subr.mxu0 0.0
    %470 = vmatpush2.xpose.msra.mxu0 0.0
    %471 = vmatprep.subr.mxu0 0.0
    %472 = vmatpush2.xpose.msra.mxu0 0.0
    %473 = vmatprep.subr.mxu0 0.0
    %474 = vmatpush2.xpose.msra.mxu0 0.0
    %475 = vmatprep.mubr.f32.mxu0 0.0
    %476 = vmatmul.mubr.f32.gmra.mxu0 %v406
    %v477 = vpop.f32.mrf.mxu0
    %v478 = vadd.f32 %v395, %v477
    %v479 = vpop.f32.mrf.mxu0
    %480 = vdwg.mxu0
    %v482 = vsel %vm404, %v223, 0
    %v485 = vsel %vm404, %v304, 0
    %487 = vmatprep.subr.mxu0 0.0
    %488 = vmatpush1.xpose.msra.mxu0 0.0
    %489 = vmatprep.subr.mxu0 0.0
    %490 = vmatpush1.xpose.msra.mxu0 0.0
    %491 = vmatprep.subr.mxu0 0.0
    %492 = vmatpush1.xpose.msra.mxu0 0.0
    %493 = vmatprep.subr.mxu0 0.0
    %494 = vmatpush1.xpose.msra.mxu0 0.0
    %495 = vmatprep.subr.mxu0 0.0
    %496 = vmatpush1.xpose.msra.mxu0 0.0
    %497 = vmatprep.subr.mxu0 0.0
    %498 = vmatpush1.xpose.msra.mxu0 0.0
    %499 = vmatprep.subr.mxu0 0.0
    %500 = vmatpush1.xpose.msra.mxu0 0.0
    %501 = vmatprep.subr.mxu0 0.0
    %502 = vmatpush1.xpose.msra.mxu0 0.0
    %503 = vmatprep.subr.mxu0 0.0
    %504 = vmatpush1.xpose.msra.mxu0 0.0
    %505 = vmatprep.subr.mxu0 0.0
    %506 = vmatpush1.xpose.msra.mxu0 0.0
    %507 = vmatprep.subr.mxu0 0.0
    %508 = vmatpush1.xpose.msra.mxu0 0.0
    %509 = vmatprep.subr.mxu0 0.0
    %510 = vmatpush1.xpose.msra.mxu0 0.0
    %511 = vmatprep.subr.mxu0 0.0
    %512 = vmatpush1.xpose.msra.mxu0 0.0
    %513 = vmatprep.subr.mxu0 0.0
    %514 = vmatpush1.xpose.msra.mxu0 0.0
    %515 = vmatprep.subr.mxu0 0.0
    %516 = vmatpush1.xpose.msra.mxu0 0.0
    %517 = vmatprep.subr.mxu0 0.0
    %518 = vmatpush1.xpose.msra.mxu0 %v485
    %519 = vmatprep.subr.mxu0 0.0
    %520 = vmatpush2.xpose.msra.mxu0 0.0
    %521 = vmatprep.subr.mxu0 0.0
    %522 = vmatpush2.xpose.msra.mxu0 0.0
    %523 = vmatprep.subr.mxu0 0.0
    %524 = vmatpush2.xpose.msra.mxu0 0.0
    %525 = vmatprep.subr.mxu0 0.0
    %526 = vmatpush2.xpose.msra.mxu0 0.0
    %527 = vmatprep.subr.mxu0 0.0
    %528 = vmatpush2.xpose.msra.mxu0 0.0
    %529 = vmatprep.subr.mxu0 0.0
    %530 = vmatpush2.xpose.msra.mxu0 0.0
    %531 = vmatprep.subr.mxu0 0.0
    %532 = vmatpush2.xpose.msra.mxu0 0.0
    %533 = vmatprep.subr.mxu0 0.0
    %534 = vmatpush2.xpose.msra.mxu0 0.0
    %535 = vmatprep.subr.mxu0 0.0
    %536 = vmatpush2.xpose.msra.mxu0 0.0
    %537 = vmatprep.subr.mxu0 0.0
    %538 = vmatpush2.xpose.msra.mxu0 0.0
    %539 = vmatprep.subr.mxu0 0.0
    %540 = vmatpush2.xpose.msra.mxu0 0.0
    %541 = vmatprep.subr.mxu0 0.0
    %542 = vmatpush2.xpose.msra.mxu0 0.0
    %543 = vmatprep.subr.mxu0 0.0
    %544 = vmatpush2.xpose.msra.mxu0 0.0
    %545 = vmatprep.subr.mxu0 0.0
    %546 = vmatpush2.xpose.msra.mxu0 0.0
    %547 = vmatprep.subr.mxu0 0.0
    %548 = vmatpush2.xpose.msra.mxu0 0.0
    %549 = vmatprep.subr.mxu0 0.0
    %550 = vmatpush2.xpose.msra.mxu0 0.0
    %551 = vmatprep.mubr.f32.mxu0 0.0
    %552 = vmatmul.mubr.f32.gmra.mxu0 %v482
    %v553 = vpop.f32.mrf.mxu0
    %v554 = vadd.f32 %v395, %v553
    %v555 = vpop.f32.mrf.mxu0
    %556 = vdwg.mxu0
    %vm557 = vcmask 64512
    %v558 = vsel %vm557, %v478, -inf
    %559 = vmax.xlane.f32.xlu0 %v558
    %v560 = vpop.xlane.xlu0 %559
    %v561 = vsel %vm557, %v554, -inf
    %562 = vmax.xlane.f32.xlu0 %v561
    %v563 = vpop.xlane.xlu0 %562
    %v564 = vsub.f32 %v478, %v560
    %v565 = vsub.f32 %v554, %v563
    %v566 = vmul.f32 %v564, 1.442695
    %v567 = vpow.pop %v566
    %v568 = vmul.f32 %v565, 1.442695
    %v569 = vpow.pop %v568
    %v570 = vsel %vm557, %v567, 0.0
    %571 = vadd.xlane.f32.xlu0 %v570
    %v572 = vpop.xlane.xlu0 %571
    %v573 = vsel %vm557, %v569, 0.0
    %574 = vadd.xlane.f32.xlu0 %v573
    %v575 = vpop.xlane.xlu0 %574
    %v576 = vrcp.pop %v572
    %v577 = vrcp.pop %v575
    %v578 = vmul.f32 %v567, %v576
    %v579 = vmul.f32 %v569, %v577
    %v581 = vsel %vm557, %v578, 0
    %583 = vmatprep.subr.mxu0 0.0
    %584 = vmatpush1.msra.mxu0 0.0
    %585 = vmatprep.subr.mxu0 0.0
    %586 = vmatpush1.msra.mxu0 0.0
    %587 = vmatprep.subr.mxu0 0.0
    %588 = vmatpush1.msra.mxu0 0.0
    %589 = vmatprep.subr.mxu0 0.0
    %590 = vmatpush1.msra.mxu0 0.0
    %591 = vmatprep.subr.mxu0 0.0
    %592 = vmatpush1.msra.mxu0 0.0
    %593 = vmatprep.subr.mxu0 0.0
    %594 = vmatpush1.msra.mxu0 0.0
    %595 = vmatprep.subr.mxu0 0.0
    %596 = vmatpush1.msra.mxu0 0.0
    %597 = vmatprep.subr.mxu0 0.0
    %598 = vmatpush1.msra.mxu0 0.0
    %599 = vmatprep.subr.mxu0 0.0
    %600 = vmatpush1.msra.mxu0 0.0
    %601 = vmatprep.subr.mxu0 0.0
    %602 = vmatpush1.msra.mxu0 0.0
    %603 = vmatprep.subr.mxu0 0.0
    %604 = vmatpush1.msra.mxu0 0.0
    %605 = vmatprep.subr.mxu0 0.0
    %606 = vmatpush1.msra.mxu0 0.0
    %607 = vmatprep.subr.mxu0 0.0
    %608 = vmatpush1.msra.mxu0 0.0
    %609 = vmatprep.subr.mxu0 0.0
    %610 = vmatpush1.msra.mxu0 0.0
    %611 = vmatprep.subr.mxu0 0.0
    %612 = vmatpush1.msra.mxu0 0.0
    %613 = vmatprep.subr.mxu0 0.0
    %614 = vmatpush1.msra.mxu0 %v382
    %615 = vmatprep.subr.mxu0 0.0
    %616 = vmatpush2.msra.mxu0 0.0
    %617 = vmatprep.subr.mxu0 0.0
    %618 = vmatpush2.msra.mxu0 0.0
    %619 = vmatprep.subr.mxu0 0.0
    %620 = vmatpush2.msra.mxu0 0.0
    %621 = vmatprep.subr.mxu0 0.0
    %622 = vmatpush2.msra.mxu0 0.0
    %623 = vmatprep.subr.mxu0 0.0
    %624 = vmatpush2.msra.mxu0 0.0
    %625 = vmatprep.subr.mxu0 0.0
    %626 = vmatpush2.msra.mxu0 0.0
    %627 = vmatprep.subr.mxu0 0.0
    %628 = vmatpush2.msra.mxu0 0.0
    %629 = vmatprep.subr.mxu0 0.0
    %630 = vmatpush2.msra.mxu0 0.0
    %631 = vmatprep.subr.mxu0 0.0
    %632 = vmatpush2.msra.mxu0 0.0
    %633 = vmatprep.subr.mxu0 0.0
    %634 = vmatpush2.msra.mxu0 0.0
    %635 = vmatprep.subr.mxu0 0.0
    %636 = vmatpush2.msra.mxu0 0.0
    %637 = vmatprep.subr.mxu0 0.0
    %638 = vmatpush2.msra.mxu0 0.0
    %639 = vmatprep.subr.mxu0 0.0
    %640 = vmatpush2.msra.mxu0 0.0
    %641 = vmatprep.subr.mxu0 0.0
    %642 = vmatpush2.msra.mxu0 0.0
    %643 = vmatprep.subr.mxu0 0.0
    %644 = vmatpush2.msra.mxu0 0.0
    %645 = vmatprep.subr.mxu0 0.0
    %646 = vmatpush2.msra.mxu0 0.0
    %647 = vmatprep.mubr.f32.mxu0 0.0
    %648 = vmatmul.mubr.f32.gmra.mxu0 %v581
    %v649 = vpop.f32.mrf.mxu0
    %v650 = vadd.f32 0.0, %v649
    %v651 = vpop.f32.mrf.mxu0
    %652 = vdwg.mxu0
    %v654 = vsel %vm557, %v579, 0
    %656 = vmatprep.subr.mxu0 0.0
    %657 = vmatpush1.msra.mxu0 0.0
    %658 = vmatprep.subr.mxu0 0.0
    %659 = vmatpush1.msra.mxu0 0.0
    %660 = vmatprep.subr.mxu0 0.0
    %661 = vmatpush1.msra.mxu0 0.0
    %662 = vmatprep.subr.mxu0 0.0
    %663 = vmatpush1.msra.mxu0 0.0
    %664 = vmatprep.subr.mxu0 0.0
    %665 = vmatpush1.msra.mxu0 0.0
    %666 = vmatprep.subr.mxu0 0.0
    %667 = vmatpush1.msra.mxu0 0.0
    %668 = vmatprep.subr.mxu0 0.0
    %669 = vmatpush1.msra.mxu0 0.0
    %670 = vmatprep.subr.mxu0 0.0
    %671 = vmatpush1.msra.mxu0 0.0
    %672 = vmatprep.subr.mxu0 0.0
    %673 = vmatpush1.msra.mxu0 0.0
    %674 = vmatprep.subr.mxu0 0.0
    %675 = vmatpush1.msra.mxu0 0.0
    %676 = vmatprep.subr.mxu0 0.0
    %677 = vmatpush1.msra.mxu0 0.0
    %678 = vmatprep.subr.mxu0 0.0
    %679 = vmatpush1.msra.mxu0 0.0
    %680 = vmatprep.subr.mxu0 0.0
    %681 = vmatpush1.msra.mxu0 0.0
    %682 = vmatprep.subr.mxu0 0.0
    %683 = vmatpush1.msra.mxu0 0.0
    %684 = vmatprep.subr.mxu0 0.0
    %685 = vmatpush1.msra.mxu0 0.0
    %686 = vmatprep.subr.mxu0 0.0
    %687 = vmatpush1.msra.mxu0 %v387
    %688 = vmatprep.subr.mxu0 0.0
    %689 = vmatpush2.msra.mxu0 0.0
    %690 = vmatprep.subr.mxu0 0.0
    %691 = vmatpush2.msra.mxu0 0.0
    %692 = vmatprep.subr.mxu0 0.0
    %693 = vmatpush2.msra.mxu0 0.0
    %694 = vmatprep.subr.mxu0 0.0
    %695 = vmatpush2.msra.mxu0 0.0
    %696 = vmatprep.subr.mxu0 0.0
    %697 = vmatpush2.msra.mxu0 0.0
    %698 = vmatprep.subr.mxu0 0.0
    %699 = vmatpush2.msra.mxu0 0.0
    %700 = vmatprep.subr.mxu0 0.0
    %701 = vmatpush2.msra.mxu0 0.0
    %702 = vmatprep.subr.mxu0 0.0
    %703 = vmatpush2.msra.mxu0 0.0
    %704 = vmatprep.subr.mxu0 0.0
    %705 = vmatpush2.msra.mxu0 0.0
    %706 = vmatprep.subr.mxu0 0.0
    %707 = vmatpush2.msra.mxu0 0.0
    %708 = vmatprep.subr.mxu0 0.0
    %709 = vmatpush2.msra.mxu0 0.0
    %710 = vmatprep.subr.mxu0 0.0
    %711 = vmatpush2.msra.mxu0 0.0
    %712 = vmatprep.subr.mxu0 0.0
    %713 = vmatpush2.msra.mxu0 0.0
    %714 = vmatprep.subr.mxu0 0.0
    %715 = vmatpush2.msra.mxu0 0.0
    %716 = vmatprep.subr.mxu0 0.0
    %717 = vmatpush2.msra.mxu0 0.0
    %718 = vmatprep.subr.mxu0 0.0
    %719 = vmatpush2.msra.mxu0 0.0
    %720 = vmatprep.mubr.f32.mxu0 0.0
    %721 = vmatmul.mubr.f32.gmra.mxu0 %v654
    %v722 = vpop.f32.mrf.mxu0
    %v723 = vadd.f32 0.0, %v722
    %v724 = vpop.f32.mrf.mxu0
    %725 = vdwg.mxu0
    %726 = vrot.lane.b32.xlu0 %v222, 112
    %v727 = vpop.permute.xlu0 %726
    %728 = vrot.lane.b32.xlu0 %v299, 112
    %v729 = vpop.permute.xlu0 %728
    %v730 = vsel %vm404, %v727, 0
    %v732 = vsel %vm404, %v729, 0
    %734 = vmatprep.subr.mxu0 0.0
    %735 = vmatpush1.xpose.msra.mxu0 0.0
    %736 = vmatprep.subr.mxu0 0.0
    %737 = vmatpush1.xpose.msra.mxu0 0.0
    %738 = vmatprep.subr.mxu0 0.0
    %739 = vmatpush1.xpose.msra.mxu0 0.0
    %740 = vmatprep.subr.mxu0 0.0
    %741 = vmatpush1.xpose.msra.mxu0 0.0
    %742 = vmatprep.subr.mxu0 0.0
    %743 = vmatpush1.xpose.msra.mxu0 0.0
    %744 = vmatprep.subr.mxu0 0.0
    %745 = vmatpush1.xpose.msra.mxu0 0.0
    %746 = vmatprep.subr.mxu0 0.0
    %747 = vmatpush1.xpose.msra.mxu0 0.0
    %748 = vmatprep.subr.mxu0 0.0
    %749 = vmatpush1.xpose.msra.mxu0 0.0
    %750 = vmatprep.subr.mxu0 0.0
    %751 = vmatpush1.xpose.msra.mxu0 0.0
    %752 = vmatprep.subr.mxu0 0.0
    %753 = vmatpush1.xpose.msra.mxu0 0.0
    %754 = vmatprep.subr.mxu0 0.0
    %755 = vmatpush1.xpose.msra.mxu0 0.0
    %756 = vmatprep.subr.mxu0 0.0
    %757 = vmatpush1.xpose.msra.mxu0 0.0
    %758 = vmatprep.subr.mxu0 0.0
    %759 = vmatpush1.xpose.msra.mxu0 0.0
    %760 = vmatprep.subr.mxu0 0.0
    %761 = vmatpush1.xpose.msra.mxu0 0.0
    %762 = vmatprep.subr.mxu0 0.0
    %763 = vmatpush1.xpose.msra.mxu0 0.0
    %764 = vmatprep.subr.mxu0 0.0
    %765 = vmatpush1.xpose.msra.mxu0 %v732
    %766 = vmatprep.subr.mxu0 0.0
    %767 = vmatpush2.xpose.msra.mxu0 0.0
    %768 = vmatprep.subr.mxu0 0.0
    %769 = vmatpush2.xpose.msra.mxu0 0.0
    %770 = vmatprep.subr.mxu0 0.0
    %771 = vmatpush2.xpose.msra.mxu0 0.0
    %772 = vmatprep.subr.mxu0 0.0
    %773 = vmatpush2.xpose.msra.mxu0 0.0
    %774 = vmatprep.subr.mxu0 0.0
    %775 = vmatpush2.xpose.msra.mxu0 0.0
    %776 = vmatprep.subr.mxu0 0.0
    %777 = vmatpush2.xpose.msra.mxu0 0.0
    %778 = vmatprep.subr.mxu0 0.0
    %779 = vmatpush2.xpose.msra.mxu0 0.0
    %780 = vmatprep.subr.mxu0 0.0
    %781 = vmatpush2.xpose.msra.mxu0 0.0
    %782 = vmatprep.subr.mxu0 0.0
    %783 = vmatpush2.xpose.msra.mxu0 0.0
    %784 = vmatprep.subr.mxu0 0.0
    %785 = vmatpush2.xpose.msra.mxu0 0.0
    %786 = vmatprep.subr.mxu0 0.0
    %787 = vmatpush2.xpose.msra.mxu0 0.0
    %788 = vmatprep.subr.mxu0 0.0
    %789 = vmatpush2.xpose.msra.mxu0 0.0
    %790 = vmatprep.subr.mxu0 0.0
    %791 = vmatpush2.xpose.msra.mxu0 0.0
    %792 = vmatprep.subr.mxu0 0.0
    %793 = vmatpush2.xpose.msra.mxu0 0.0
    %794 = vmatprep.subr.mxu0 0.0
    %795 = vmatpush2.xpose.msra.mxu0 0.0
    %796 = vmatprep.subr.mxu0 0.0
    %797 = vmatpush2.xpose.msra.mxu0 0.0
    %798 = vmatprep.mubr.f32.mxu0 0.0
    %799 = vmatmul.mubr.f32.gmra.mxu0 %v730
    %v800 = vpop.f32.mrf.mxu0
    %v801 = vadd.f32 %v395, %v800
    %v802 = vpop.f32.mrf.mxu0
    %803 = vdwg.mxu0
    %804 = vrot.lane.b32.xlu0 %v223, 112
    %v805 = vpop.permute.xlu0 %804
    %806 = vrot.lane.b32.xlu0 %v304, 112
    %v807 = vpop.permute.xlu0 %806
    %v808 = vsel %vm404, %v805, 0
    %v810 = vsel %vm404, %v807, 0
    %812 = vmatprep.subr.mxu0 0.0
    %813 = vmatpush1.xpose.msra.mxu0 0.0
    %814 = vmatprep.subr.mxu0 0.0
    %815 = vmatpush1.xpose.msra.mxu0 0.0
    %816 = vmatprep.subr.mxu0 0.0
    %817 = vmatpush1.xpose.msra.mxu0 0.0
    %818 = vmatprep.subr.mxu0 0.0
    %819 = vmatpush1.xpose.msra.mxu0 0.0
    %820 = vmatprep.subr.mxu0 0.0
    %821 = vmatpush1.xpose.msra.mxu0 0.0
    %822 = vmatprep.subr.mxu0 0.0
    %823 = vmatpush1.xpose.msra.mxu0 0.0
    %824 = vmatprep.subr.mxu0 0.0
    %825 = vmatpush1.xpose.msra.mxu0 0.0
    %826 = vmatprep.subr.mxu0 0.0
    %827 = vmatpush1.xpose.msra.mxu0 0.0
    %828 = vmatprep.subr.mxu0 0.0
    %829 = vmatpush1.xpose.msra.mxu0 0.0
    %830 = vmatprep.subr.mxu0 0.0
    %831 = vmatpush1.xpose.msra.mxu0 0.0
    %832 = vmatprep.subr.mxu0 0.0
    %833 = vmatpush1.xpose.msra.mxu0 0.0
    %834 = vmatprep.subr.mxu0 0.0
    %835 = vmatpush1.xpose.msra.mxu0 0.0
    %836 = vmatprep.subr.mxu0 0.0
    %837 = vmatpush1.xpose.msra.mxu0 0.0
    %838 = vmatprep.subr.mxu0 0.0
    %839 = vmatpush1.xpose.msra.mxu0 0.0
    %840 = vmatprep.subr.mxu0 0.0
    %841 = vmatpush1.xpose.msra.mxu0 0.0
    %842 = vmatprep.subr.mxu0 0.0
    %843 = vmatpush1.xpose.msra.mxu0 %v810
    %844 = vmatprep.subr.mxu0 0.0
    %845 = vmatpush2.xpose.msra.mxu0 0.0
    %846 = vmatprep.subr.mxu0 0.0
    %847 = vmatpush2.xpose.msra.mxu0 0.0
    %848 = vmatprep.subr.mxu0 0.0
    %849 = vmatpush2.xpose.msra.mxu0 0.0
    %850 = vmatprep.subr.mxu0 0.0
    %851 = vmatpush2.xpose.msra.mxu0 0.0
    %852 = vmatprep.subr.mxu0 0.0
    %853 = vmatpush2.xpose.msra.mxu0 0.0
    %854 = vmatprep.subr.mxu0 0.0
    %855 = vmatpush2.xpose.msra.mxu0 0.0
    %856 = vmatprep.subr.mxu0 0.0
    %857 = vmatpush2.xpose.msra.mxu0 0.0
    %858 = vmatprep.subr.mxu0 0.0
    %859 = vmatpush2.xpose.msra.mxu0 0.0
    %860 = vmatprep.subr.mxu0 0.0
    %861 = vmatpush2.xpose.msra.mxu0 0.0
    %862 = vmatprep.subr.mxu0 0.0
    %863 = vmatpush2.xpose.msra.mxu0 0.0
    %864 = vmatprep.subr.mxu0 0.0
    %865 = vmatpush2.xpose.msra.mxu0 0.0
    %866 = vmatprep.subr.mxu0 0.0
    %867 = vmatpush2.xpose.msra.mxu0 0.0
    %868 = vmatprep.subr.mxu0 0.0
    %869 = vmatpush2.xpose.msra.mxu0 0.0
    %870 = vmatprep.subr.mxu0 0.0
    %871 = vmatpush2.xpose.msra.mxu0 0.0
    %872 = vmatprep.subr.mxu0 0.0
    %873 = vmatpush2.xpose.msra.mxu0 0.0
    %874 = vmatprep.subr.mxu0 0.0
    %875 = vmatpush2.xpose.msra.mxu0 0.0
    %876 = vmatprep.mubr.f32.mxu0 0.0
    %877 = vmatmul.mubr.f32.gmra.mxu0 %v808
    %v878 = vpop.f32.mrf.mxu0
    %v879 = vadd.f32 %v395, %v878
    %v880 = vpop.f32.mrf.mxu0
    %881 = vdwg.mxu0
    %v882 = vsel %vm557, %v801, -inf
    %883 = vmax.xlane.f32.xlu0 %v882
    %v884 = vpop.xlane.xlu0 %883
    %v885 = vsel %vm557, %v879, -inf
    %886 = vmax.xlane.f32.xlu0 %v885
    %v887 = vpop.xlane.xlu0 %886
    %v888 = vsub.f32 %v801, %v884
    %v889 = vsub.f32 %v879, %v887
    %v890 = vmul.f32 %v888, 1.442695
    %v891 = vpow.pop %v890
    %v892 = vmul.f32 %v889, 1.442695
    %v893 = vpow.pop %v892
    %v894 = vsel %vm557, %v891, 0.0
    %895 = vadd.xlane.f32.xlu0 %v894
    %v896 = vpop.xlane.xlu0 %895
    %v897 = vsel %vm557, %v893, 0.0
    %898 = vadd.xlane.f32.xlu0 %v897
    %v899 = vpop.xlane.xlu0 %898
    %v900 = vrcp.pop %v896
    %v901 = vrcp.pop %v899
    %v902 = vmul.f32 %v891, %v900
    %v903 = vmul.f32 %v893, %v901
    %905 = vrot.lane.b32.xlu0 %v382, 112
    %v906 = vpop.permute.xlu0 %905
    %v909 = vsel %vm557, %v902, 0
    %911 = vmatprep.subr.mxu0 0.0
    %912 = vmatpush1.msra.mxu0 0.0
    %913 = vmatprep.subr.mxu0 0.0
    %914 = vmatpush1.msra.mxu0 0.0
    %915 = vmatprep.subr.mxu0 0.0
    %916 = vmatpush1.msra.mxu0 0.0
    %917 = vmatprep.subr.mxu0 0.0
    %918 = vmatpush1.msra.mxu0 0.0
    %919 = vmatprep.subr.mxu0 0.0
    %920 = vmatpush1.msra.mxu0 0.0
    %921 = vmatprep.subr.mxu0 0.0
    %922 = vmatpush1.msra.mxu0 0.0
    %923 = vmatprep.subr.mxu0 0.0
    %924 = vmatpush1.msra.mxu0 0.0
    %925 = vmatprep.subr.mxu0 0.0
    %926 = vmatpush1.msra.mxu0 0.0
    %927 = vmatprep.subr.mxu0 0.0
    %928 = vmatpush1.msra.mxu0 0.0
    %929 = vmatprep.subr.mxu0 0.0
    %930 = vmatpush1.msra.mxu0 0.0
    %931 = vmatprep.subr.mxu0 0.0
    %932 = vmatpush1.msra.mxu0 0.0
    %933 = vmatprep.subr.mxu0 0.0
    %934 = vmatpush1.msra.mxu0 0.0
    %935 = vmatprep.subr.mxu0 0.0
    %936 = vmatpush1.msra.mxu0 0.0
    %937 = vmatprep.subr.mxu0 0.0
    %938 = vmatpush1.msra.mxu0 0.0
    %939 = vmatprep.subr.mxu0 0.0
    %940 = vmatpush1.msra.mxu0 0.0
    %941 = vmatprep.subr.mxu0 0.0
    %942 = vmatpush1.msra.mxu0 %v906
    %943 = vmatprep.subr.mxu0 0.0
    %944 = vmatpush2.msra.mxu0 0.0
    %945 = vmatprep.subr.mxu0 0.0
    %946 = vmatpush2.msra.mxu0 0.0
    %947 = vmatprep.subr.mxu0 0.0
    %948 = vmatpush2.msra.mxu0 0.0
    %949 = vmatprep.subr.mxu0 0.0
    %950 = vmatpush2.msra.mxu0 0.0
    %951 = vmatprep.subr.mxu0 0.0
    %952 = vmatpush2.msra.mxu0 0.0
    %953 = vmatprep.subr.mxu0 0.0
    %954 = vmatpush2.msra.mxu0 0.0
    %955 = vmatprep.subr.mxu0 0.0
    %956 = vmatpush2.msra.mxu0 0.0
    %957 = vmatprep.subr.mxu0 0.0
    %958 = vmatpush2.msra.mxu0 0.0
    %959 = vmatprep.subr.mxu0 0.0
    %960 = vmatpush2.msra.mxu0 0.0
    %961 = vmatprep.subr.mxu0 0.0
    %962 = vmatpush2.msra.mxu0 0.0
    %963 = vmatprep.subr.mxu0 0.0
    %964 = vmatpush2.msra.mxu0 0.0
    %965 = vmatprep.subr.mxu0 0.0
    %966 = vmatpush2.msra.mxu0 0.0
    %967 = vmatprep.subr.mxu0 0.0
    %968 = vmatpush2.msra.mxu0 0.0
    %969 = vmatprep.subr.mxu0 0.0
    %970 = vmatpush2.msra.mxu0 0.0
    %971 = vmatprep.subr.mxu0 0.0
    %972 = vmatpush2.msra.mxu0 0.0
    %973 = vmatprep.subr.mxu0 0.0
    %974 = vmatpush2.msra.mxu0 0.0
    %975 = vmatprep.mubr.f32.mxu0 0.0
    %976 = vmatmul.mubr.f32.gmra.mxu0 %v909
    %v977 = vpop.f32.mrf.mxu0
    %v978 = vadd.f32 0.0, %v977
    %v979 = vpop.f32.mrf.mxu0
    %980 = vdwg.mxu0
    %982 = vrot.lane.b32.xlu0 %v387, 112
    %v983 = vpop.permute.xlu0 %982
    %v986 = vsel %vm557, %v903, 0
    %988 = vmatprep.subr.mxu0 0.0
    %989 = vmatpush1.msra.mxu0 0.0
    %990 = vmatprep.subr.mxu0 0.0
    %991 = vmatpush1.msra.mxu0 0.0
    %992 = vmatprep.subr.mxu0 0.0
    %993 = vmatpush1.msra.mxu0 0.0
    %994 = vmatprep.subr.mxu0 0.0
    %995 = vmatpush1.msra.mxu0 0.0
    %996 = vmatprep.subr.mxu0 0.0
    %997 = vmatpush1.msra.mxu0 0.0
    %998 = vmatprep.subr.mxu0 0.0
    %999 = vmatpush1.msra.mxu0 0.0
    %1000 = vmatprep.subr.mxu0 0.0
    %1001 = vmatpush1.msra.mxu0 0.0
    %1002 = vmatprep.subr.mxu0 0.0
    %1003 = vmatpush1.msra.mxu0 0.0
    %1004 = vmatprep.subr.mxu0 0.0
    %1005 = vmatpush1.msra.mxu0 0.0
    %1006 = vmatprep.subr.mxu0 0.0
    %1007 = vmatpush1.msra.mxu0 0.0
    %1008 = vmatprep.subr.mxu0 0.0
    %1009 = vmatpush1.msra.mxu0 0.0
    %1010 = vmatprep.subr.mxu0 0.0
    %1011 = vmatpush1.msra.mxu0 0.0
    %1012 = vmatprep.subr.mxu0 0.0
    %1013 = vmatpush1.msra.mxu0 0.0
    %1014 = vmatprep.subr.mxu0 0.0
    %1015 = vmatpush1.msra.mxu0 0.0
    %1016 = vmatprep.subr.mxu0 0.0
    %1017 = vmatpush1.msra.mxu0 0.0
    %1018 = vmatprep.subr.mxu0 0.0
    %1019 = vmatpush1.msra.mxu0 %v983
    %1020 = vmatprep.subr.mxu0 0.0
    %1021 = vmatpush2.msra.mxu0 0.0
    %1022 = vmatprep.subr.mxu0 0.0
    %1023 = vmatpush2.msra.mxu0 0.0
    %1024 = vmatprep.subr.mxu0 0.0
    %1025 = vmatpush2.msra.mxu0 0.0
    %1026 = vmatprep.subr.mxu0 0.0
    %1027 = vmatpush2.msra.mxu0 0.0
    %1028 = vmatprep.subr.mxu0 0.0
    %1029 = vmatpush2.msra.mxu0 0.0
    %1030 = vmatprep.subr.mxu0 0.0
    %1031 = vmatpush2.msra.mxu0 0.0
    %1032 = vmatprep.subr.mxu0 0.0
    %1033 = vmatpush2.msra.mxu0 0.0
    %1034 = vmatprep.subr.mxu0 0.0
    %1035 = vmatpush2.msra.mxu0 0.0
    %1036 = vmatprep.subr.mxu0 0.0
    %1037 = vmatpush2.msra.mxu0 0.0
    %1038 = vmatprep.subr.mxu0 0.0
    %1039 = vmatpush2.msra.mxu0 0.0
    %1040 = vmatprep.subr.mxu0 0.0
    %1041 = vmatpush2.msra.mxu0 0.0
    %1042 = vmatprep.subr.mxu0 0.0
    %1043 = vmatpush2.msra.mxu0 0.0
    %1044 = vmatprep.subr.mxu0 0.0
    %1045 = vmatpush2.msra.mxu0 0.0
    %1046 = vmatprep.subr.mxu0 0.0
    %1047 = vmatpush2.msra.mxu0 0.0
    %1048 = vmatprep.subr.mxu0 0.0
    %1049 = vmatpush2.msra.mxu0 0.0
    %1050 = vmatprep.subr.mxu0 0.0
    %1051 = vmatpush2.msra.mxu0 0.0
    %1052 = vmatprep.mubr.f32.mxu0 0.0
    %1053 = vmatmul.mubr.f32.gmra.mxu0 %v986
    %v1054 = vpop.f32.mrf.mxu0
    %v1055 = vadd.f32 0.0, %v1054
    %v1056 = vpop.f32.mrf.mxu0
    %1057 = vdwg.mxu0
    %v1059 = vsel %vm404, %v978, 0
    %v1062 = vsel %vm404, %v1055, 0
    %1064 = vmatprep.subr.mxu0 0.0
    %1065 = vmatpush1.msra.mxu0 0.0
    %1066 = vmatprep.subr.mxu0 0.0
    %1067 = vmatpush1.msra.mxu0 0.0
    %1068 = vmatprep.subr.mxu0 0.0
    %1069 = vmatpush1.msra.mxu0 0.0
    %1070 = vmatprep.subr.mxu0 0.0
    %1071 = vmatpush1.msra.mxu0 0.0
    %1072 = vmatprep.subr.mxu0 0.0
    %1073 = vmatpush1.msra.mxu0 0.0
    %1074 = vmatprep.subr.mxu0 0.0
    %1075 = vmatpush1.msra.mxu0 0.0
    %1076 = vmatprep.subr.mxu0 0.0
    %1077 = vmatpush1.msra.mxu0 0.0
    %1078 = vmatprep.subr.mxu0 0.0
    %1079 = vmatpush1.msra.mxu0 0.0
    %1080 = vmatprep.subr.mxu0 0.0
    %1081 = vmatpush1.msra.mxu0 0.0
    %1082 = vmatprep.subr.mxu0 0.0
    %1083 = vmatpush1.msra.mxu0 0.0
    %1084 = vmatprep.subr.mxu0 0.0
    %1085 = vmatpush1.msra.mxu0 0.0
    %1086 = vmatprep.subr.mxu0 0.0
    %1087 = vmatpush1.msra.mxu0 0.0
    %1088 = vmatprep.subr.mxu0 0.0
    %1089 = vmatpush1.msra.mxu0 0.0
    %1090 = vmatprep.subr.mxu0 0.0
    %1091 = vmatpush1.msra.mxu0 0.0
    %1092 = vmatprep.subr.mxu0 0.0
    %1093 = vmatpush1.msra.mxu0 %v399
    %1094 = vmatprep.subr.mxu0 0.0
    %1095 = vmatpush1.msra.mxu0 %v398
    %1096 = vmatprep.subr.mxu0 0.0
    %1097 = vmatpush2.msra.mxu0 0.0
    %1098 = vmatprep.subr.mxu0 0.0
    %1099 = vmatpush2.msra.mxu0 0.0
    %1100 = vmatprep.subr.mxu0 0.0
    %1101 = vmatpush2.msra.mxu0 0.0
    %1102 = vmatprep.subr.mxu0 0.0
    %1103 = vmatpush2.msra.mxu0 0.0
    %1104 = vmatprep.subr.mxu0 0.0
    %1105 = vmatpush2.msra.mxu0 0.0
    %1106 = vmatprep.subr.mxu0 0.0
    %1107 = vmatpush2.msra.mxu0 0.0
    %1108 = vmatprep.subr.mxu0 0.0
    %1109 = vmatpush2.msra.mxu0 0.0
    %1110 = vmatprep.subr.mxu0 0.0
    %1111 = vmatpush2.msra.mxu0 0.0
    %1112 = vmatprep.subr.mxu0 0.0
    %1113 = vmatpush2.msra.mxu0 0.0
    %1114 = vmatprep.subr.mxu0 0.0
    %1115 = vmatpush2.msra.mxu0 0.0
    %1116 = vmatprep.subr.mxu0 0.0
    %1117 = vmatpush2.msra.mxu0 0.0
    %1118 = vmatprep.subr.mxu0 0.0
    %1119 = vmatpush2.msra.mxu0 0.0
    %1120 = vmatprep.subr.mxu0 0.0
    %1121 = vmatpush2.msra.mxu0 0.0
    %1122 = vmatprep.subr.mxu0 0.0
    %1123 = vmatpush2.msra.mxu0 0.0
    %1124 = vmatprep.subr.mxu0 0.0
    %1125 = vmatpush2.msra.mxu0 0.0
    %1126 = vmatprep.subr.mxu0 0.0
    %1127 = vmatpush2.msra.mxu0 0.0
    %1128 = vmatprep.mubr.f32.mxu0 0.0
    %1129 = vmatmul.mubr.f32.gmra.mxu0 %v1059
    %v1130 = vpop.f32.mrf.mxu0
    %v1131 = vadd.f32 0.0, %v1130
    %v1132 = vpop.f32.mrf.mxu0
    %1133 = vmatprep.mubr.f32.mxu0 0.0
    %1134 = vmatmul.mubr.f32.gmra.mxu0 %v1062
    %v1135 = vpop.f32.mrf.mxu0
    %v1136 = vadd.f32 0.0, %v1135
    %v1137 = vpop.f32.mrf.mxu0
    %1138 = vdwg.mxu0
    %v1140 = vsel %vm404, %v650, 0
    %v1143 = vsel %vm404, %v723, 0
    %1145 = vmatprep.subr.mxu0 0.0
    %1146 = vmatpush1.msra.mxu0 0.0
    %1147 = vmatprep.subr.mxu0 0.0
    %1148 = vmatpush1.msra.mxu0 0.0
    %1149 = vmatprep.subr.mxu0 0.0
    %1150 = vmatpush1.msra.mxu0 0.0
    %1151 = vmatprep.subr.mxu0 0.0
    %1152 = vmatpush1.msra.mxu0 0.0
    %1153 = vmatprep.subr.mxu0 0.0
    %1154 = vmatpush1.msra.mxu0 0.0
    %1155 = vmatprep.subr.mxu0 0.0
    %1156 = vmatpush1.msra.mxu0 0.0
    %1157 = vmatprep.subr.mxu0 0.0
    %1158 = vmatpush1.msra.mxu0 0.0
    %1159 = vmatprep.subr.mxu0 0.0
    %1160 = vmatpush1.msra.mxu0 0.0
    %1161 = vmatprep.subr.mxu0 0.0
    %1162 = vmatpush1.msra.mxu0 0.0
    %1163 = vmatprep.subr.mxu0 0.0
    %1164 = vmatpush1.msra.mxu0 0.0
    %1165 = vmatprep.subr.mxu0 0.0
    %1166 = vmatpush1.msra.mxu0 0.0
    %1167 = vmatprep.subr.mxu0 0.0
    %1168 = vmatpush1.msra.mxu0 0.0
    %1169 = vmatprep.subr.mxu0 0.0
    %1170 = vmatpush1.msra.mxu0 0.0
    %1171 = vmatprep.subr.mxu0 0.0
    %1172 = vmatpush1.msra.mxu0 0.0
    %1173 = vmatprep.subr.mxu0 0.0
    %1174 = vmatpush1.msra.mxu0 %v397
    %1175 = vmatprep.subr.mxu0 0.0
    %1176 = vmatpush1.msra.mxu0 %v396
    %1177 = vmatprep.subr.mxu0 0.0
    %1178 = vmatpush2.msra.mxu0 0.0
    %1179 = vmatprep.subr.mxu0 0.0
    %1180 = vmatpush2.msra.mxu0 0.0
    %1181 = vmatprep.subr.mxu0 0.0
    %1182 = vmatpush2.msra.mxu0 0.0
    %1183 = vmatprep.subr.mxu0 0.0
    %1184 = vmatpush2.msra.mxu0 0.0
    %1185 = vmatprep.subr.mxu0 0.0
    %1186 = vmatpush2.msra.mxu0 0.0
    %1187 = vmatprep.subr.mxu0 0.0
    %1188 = vmatpush2.msra.mxu0 0.0
    %1189 = vmatprep.subr.mxu0 0.0
    %1190 = vmatpush2.msra.mxu0 0.0
    %1191 = vmatprep.subr.mxu0 0.0
    %1192 = vmatpush2.msra.mxu0 0.0
    %1193 = vmatprep.subr.mxu0 0.0
    %1194 = vmatpush2.msra.mxu0 0.0
    %1195 = vmatprep.subr.mxu0 0.0
    %1196 = vmatpush2.msra.mxu0 0.0
    %1197 = vmatprep.subr.mxu0 0.0
    %1198 = vmatpush2.msra.mxu0 0.0
    %1199 = vmatprep.subr.mxu0 0.0
    %1200 = vmatpush2.msra.mxu0 0.0
    %1201 = vmatprep.subr.mxu0 0.0
    %1202 = vmatpush2.msra.mxu0 0.0
    %1203 = vmatprep.subr.mxu0 0.0
    %1204 = vmatpush2.msra.mxu0 0.0
    %1205 = vmatprep.subr.mxu0 0.0
    %1206 = vmatpush2.msra.mxu0 0.0
    %1207 = vmatprep.subr.mxu0 0.0
    %1208 = vmatpush2.msra.mxu0 0.0
    %1209 = vmatprep.mubr.f32.mxu0 0.0
    %1210 = vmatmul.mubr.f32.gmra.mxu0 %v1140
    %v1211 = vpop.f32.mrf.mxu0
    %v1212 = vadd.f32 %v1131, %v1211
    %v1213 = vpop.f32.mrf.mxu0
    %1214 = vmatprep.mubr.f32.mxu0 0.0
    %1215 = vmatmul.mubr.f32.gmra.mxu0 %v1143
    %v1216 = vpop.f32.mrf.mxu0
    %v1217 = vadd.f32 %v1136, %v1216
    %v1218 = vpop.f32.mrf.mxu0
    %1219 = vdwg.mxu0
    %1220 = vrot.lane.b32.xlu0 %v222, 96
    %v1221 = vpop.permute.xlu0 %1220
    %1222 = vrot.lane.b32.xlu0 %v299, 96
    %v1223 = vpop.permute.xlu0 %1222
    %v1224 = vsel %vm404, %v1221, 0
    %v1226 = vsel %vm404, %v1223, 0
    %1228 = vmatprep.subr.mxu0 0.0
    %1229 = vmatpush1.xpose.msra.mxu0 0.0
    %1230 = vmatprep.subr.mxu0 0.0
    %1231 = vmatpush1.xpose.msra.mxu0 0.0
    %1232 = vmatprep.subr.mxu0 0.0
    %1233 = vmatpush1.xpose.msra.mxu0 0.0
    %1234 = vmatprep.subr.mxu0 0.0
    %1235 = vmatpush1.xpose.msra.mxu0 0.0
    %1236 = vmatprep.subr.mxu0 0.0
    %1237 = vmatpush1.xpose.msra.mxu0 0.0
    %1238 = vmatprep.subr.mxu0 0.0
    %1239 = vmatpush1.xpose.msra.mxu0 0.0
    %1240 = vmatprep.subr.mxu0 0.0
    %1241 = vmatpush1.xpose.msra.mxu0 0.0
    %1242 = vmatprep.subr.mxu0 0.0
    %1243 = vmatpush1.xpose.msra.mxu0 0.0
    %1244 = vmatprep.subr.mxu0 0.0
    %1245 = vmatpush1.xpose.msra.mxu0 0.0
    %1246 = vmatprep.subr.mxu0 0.0
    %1247 = vmatpush1.xpose.msra.mxu0 0.0
    %1248 = vmatprep.subr.mxu0 0.0
    %1249 = vmatpush1.xpose.msra.mxu0 0.0
    %1250 = vmatprep.subr.mxu0 0.0
    %1251 = vmatpush1.xpose.msra.mxu0 0.0
    %1252 = vmatprep.subr.mxu0 0.0
    %1253 = vmatpush1.xpose.msra.mxu0 0.0
    %1254 = vmatprep.subr.mxu0 0.0
    %1255 = vmatpush1.xpose.msra.mxu0 0.0
    %1256 = vmatprep.subr.mxu0 0.0
    %1257 = vmatpush1.xpose.msra.mxu0 0.0
    %1258 = vmatprep.subr.mxu0 0.0
    %1259 = vmatpush1.xpose.msra.mxu0 %v1226
    %1260 = vmatprep.subr.mxu0 0.0
    %1261 = vmatpush2.xpose.msra.mxu0 0.0
    %1262 = vmatprep.subr.mxu0 0.0
    %1263 = vmatpush2.xpose.msra.mxu0 0.0
    %1264 = vmatprep.subr.mxu0 0.0
    %1265 = vmatpush2.xpose.msra.mxu0 0.0
    %1266 = vmatprep.subr.mxu0 0.0
    %1267 = vmatpush2.xpose.msra.mxu0 0.0
    %1268 = vmatprep.subr.mxu0 0.0
    %1269 = vmatpush2.xpose.msra.mxu0 0.0
    %1270 = vmatprep.subr.mxu0 0.0
    %1271 = vmatpush2.xpose.msra.mxu0 0.0
    %1272 = vmatprep.subr.mxu0 0.0
    %1273 = vmatpush2.xpose.msra.mxu0 0.0
    %1274 = vmatprep.subr.mxu0 0.0
    %1275 = vmatpush2.xpose.msra.mxu0 0.0
    %1276 = vmatprep.subr.mxu0 0.0
    %1277 = vmatpush2.xpose.msra.mxu0 0.0
    %1278 = vmatprep.subr.mxu0 0.0
    %1279 = vmatpush2.xpose.msra.mxu0 0.0
    %1280 = vmatprep.subr.mxu0 0.0
    %1281 = vmatpush2.xpose.msra.mxu0 0.0
    %1282 = vmatprep.subr.mxu0 0.0
    %1283 = vmatpush2.xpose.msra.mxu0 0.0
    %1284 = vmatprep.subr.mxu0 0.0
    %1285 = vmatpush2.xpose.msra.mxu0 0.0
    %1286 = vmatprep.subr.mxu0 0.0
    %1287 = vmatpush2.xpose.msra.mxu0 0.0
    %1288 = vmatprep.subr.mxu0 0.0
    %1289 = vmatpush2.xpose.msra.mxu0 0.0
    %1290 = vmatprep.subr.mxu0 0.0
    %1291 = vmatpush2.xpose.msra.mxu0 0.0
    %1292 = vmatprep.mubr.f32.mxu0 0.0
    %1293 = vmatmul.mubr.f32.gmra.mxu0 %v1224
    %v1294 = vpop.f32.mrf.mxu0
    %v1295 = vadd.f32 %v395, %v1294
    %v1296 = vpop.f32.mrf.mxu0
    %1297 = vdwg.mxu0
    %1298 = vrot.lane.b32.xlu0 %v223, 96
    %v1299 = vpop.permute.xlu0 %1298
    %1300 = vrot.lane.b32.xlu0 %v304, 96
    %v1301 = vpop.permute.xlu0 %1300
    %v1302 = vsel %vm404, %v1299, 0
    %v1304 = vsel %vm404, %v1301, 0
    %1306 = vmatprep.subr.mxu0 0.0
    %1307 = vmatpush1.xpose.msra.mxu0 0.0
    %1308 = vmatprep.subr.mxu0 0.0
    %1309 = vmatpush1.xpose.msra.mxu0 0.0
    %1310 = vmatprep.subr.mxu0 0.0
    %1311 = vmatpush1.xpose.msra.mxu0 0.0
    %1312 = vmatprep.subr.mxu0 0.0
    %1313 = vmatpush1.xpose.msra.mxu0 0.0
    %1314 = vmatprep.subr.mxu0 0.0
    %1315 = vmatpush1.xpose.msra.mxu0 0.0
    %1316 = vmatprep.subr.mxu0 0.0
    %1317 = vmatpush1.xpose.msra.mxu0 0.0
    %1318 = vmatprep.subr.mxu0 0.0
    %1319 = vmatpush1.xpose.msra.mxu0 0.0
    %1320 = vmatprep.subr.mxu0 0.0
    %1321 = vmatpush1.xpose.msra.mxu0 0.0
    %1322 = vmatprep.subr.mxu0 0.0
    %1323 = vmatpush1.xpose.msra.mxu0 0.0
    %1324 = vmatprep.subr.mxu0 0.0
    %1325 = vmatpush1.xpose.msra.mxu0 0.0
    %1326 = vmatprep.subr.mxu0 0.0
    %1327 = vmatpush1.xpose.msra.mxu0 0.0
    %1328 = vmatprep.subr.mxu0 0.0
    %1329 = vmatpush1.xpose.msra.mxu0 0.0
    %1330 = vmatprep.subr.mxu0 0.0
    %1331 = vmatpush1.xpose.msra.mxu0 0.0
    %1332 = vmatprep.subr.mxu0 0.0
    %1333 = vmatpush1.xpose.msra.mxu0 0.0
    %1334 = vmatprep.subr.mxu0 0.0
    %1335 = vmatpush1.xpose.msra.mxu0 0.0
    %1336 = vmatprep.subr.mxu0 0.0
    %1337 = vmatpush1.xpose.msra.mxu0 %v1304
    %1338 = vmatprep.subr.mxu0 0.0
    %1339 = vmatpush2.xpose.msra.mxu0 0.0
    %1340 = vmatprep.subr.mxu0 0.0
    %1341 = vmatpush2.xpose.msra.mxu0 0.0
    %1342 = vmatprep.subr.mxu0 0.0
    %1343 = vmatpush2.xpose.msra.mxu0 0.0
    %1344 = vmatprep.subr.mxu0 0.0
    %1345 = vmatpush2.xpose.msra.mxu0 0.0
    %1346 = vmatprep.subr.mxu0 0.0
    %1347 = vmatpush2.xpose.msra.mxu0 0.0
    %1348 = vmatprep.subr.mxu0 0.0
    %1349 = vmatpush2.xpose.msra.mxu0 0.0
    %1350 = vmatprep.subr.mxu0 0.0
    %1351 = vmatpush2.xpose.msra.mxu0 0.0
    %1352 = vmatprep.subr.mxu0 0.0
    %1353 = vmatpush2.xpose.msra.mxu0 0.0
    %1354 = vmatprep.subr.mxu0 0.0
    %1355 = vmatpush2.xpose.msra.mxu0 0.0
    %1356 = vmatprep.subr.mxu0 0.0
    %1357 = vmatpush2.xpose.msra.mxu0 0.0
    %1358 = vmatprep.subr.mxu0 0.0
    %1359 = vmatpush2.xpose.msra.mxu0 0.0
    %1360 = vmatprep.subr.mxu0 0.0
    %1361 = vmatpush2.xpose.msra.mxu0 0.0
    %1362 = vmatprep.subr.mxu0 0.0
    %1363 = vmatpush2.xpose.msra.mxu0 0.0
    %1364 = vmatprep.subr.mxu0 0.0
    %1365 = vmatpush2.xpose.msra.mxu0 0.0
    %1366 = vmatprep.subr.mxu0 0.0
    %1367 = vmatpush2.xpose.msra.mxu0 0.0
    %1368 = vmatprep.subr.mxu0 0.0
    %1369 = vmatpush2.xpose.msra.mxu0 0.0
    %1370 = vmatprep.mubr.f32.mxu0 0.0
    %1371 = vmatmul.mubr.f32.gmra.mxu0 %v1302
    %v1372 = vpop.f32.mrf.mxu0
    %v1373 = vadd.f32 %v395, %v1372
    %v1374 = vpop.f32.mrf.mxu0
    %1375 = vdwg.mxu0
    %v1376 = vsel %vm557, %v1295, -inf
    %1377 = vmax.xlane.f32.xlu0 %v1376
    %v1378 = vpop.xlane.xlu0 %1377
    %v1379 = vsel %vm557, %v1373, -inf
    %1380 = vmax.xlane.f32.xlu0 %v1379
    %v1381 = vpop.xlane.xlu0 %1380
    %v1382 = vsub.f32 %v1295, %v1378
    %v1383 = vsub.f32 %v1373, %v1381
    %v1384 = vmul.f32 %v1382, 1.442695
    %v1385 = vpow.pop %v1384
    %v1386 = vmul.f32 %v1383, 1.442695
    %v1387 = vpow.pop %v1386
    %v1388 = vsel %vm557, %v1385, 0.0
    %1389 = vadd.xlane.f32.xlu0 %v1388
    %v1390 = vpop.xlane.xlu0 %1389
    %v1391 = vsel %vm557, %v1387, 0.0
    %1392 = vadd.xlane.f32.xlu0 %v1391
    %v1393 = vpop.xlane.xlu0 %1392
    %v1394 = vrcp.pop %v1390
    %v1395 = vrcp.pop %v1393
    %v1396 = vmul.f32 %v1385, %v1394
    %v1397 = vmul.f32 %v1387, %v1395
    %1398 = vrot.lane.b32.xlu0 %v382, 96
    %v1399 = vpop.permute.xlu0 %1398
    %v1402 = vsel %vm557, %v1396, 0
    %1404 = vmatprep.subr.mxu0 0.0
    %1405 = vmatpush1.msra.mxu0 0.0
    %1406 = vmatprep.subr.mxu0 0.0
    %1407 = vmatpush1.msra.mxu0 0.0
    %1408 = vmatprep.subr.mxu0 0.0
    %1409 = vmatpush1.msra.mxu0 0.0
    %1410 = vmatprep.subr.mxu0 0.0
    %1411 = vmatpush1.msra.mxu0 0.0
    %1412 = vmatprep.subr.mxu0 0.0
    %1413 = vmatpush1.msra.mxu0 0.0
    %1414 = vmatprep.subr.mxu0 0.0
    %1415 = vmatpush1.msra.mxu0 0.0
    %1416 = vmatprep.subr.mxu0 0.0
    %1417 = vmatpush1.msra.mxu0 0.0
    %1418 = vmatprep.subr.mxu0 0.0
    %1419 = vmatpush1.msra.mxu0 0.0
    %1420 = vmatprep.subr.mxu0 0.0
    %1421 = vmatpush1.msra.mxu0 0.0
    %1422 = vmatprep.subr.mxu0 0.0
    %1423 = vmatpush1.msra.mxu0 0.0
    %1424 = vmatprep.subr.mxu0 0.0
    %1425 = vmatpush1.msra.mxu0 0.0
    %1426 = vmatprep.subr.mxu0 0.0
    %1427 = vmatpush1.msra.mxu0 0.0
    %1428 = vmatprep.subr.mxu0 0.0
    %1429 = vmatpush1.msra.mxu0 0.0
    %1430 = vmatprep.subr.mxu0 0.0
    %1431 = vmatpush1.msra.mxu0 0.0
    %1432 = vmatprep.subr.mxu0 0.0
    %1433 = vmatpush1.msra.mxu0 0.0
    %1434 = vmatprep.subr.mxu0 0.0
    %1435 = vmatpush1.msra.mxu0 %v1399
    %1436 = vmatprep.subr.mxu0 0.0
    %1437 = vmatpush2.msra.mxu0 0.0
    %1438 = vmatprep.subr.mxu0 0.0
    %1439 = vmatpush2.msra.mxu0 0.0
    %1440 = vmatprep.subr.mxu0 0.0
    %1441 = vmatpush2.msra.mxu0 0.0
    %1442 = vmatprep.subr.mxu0 0.0
    %1443 = vmatpush2.msra.mxu0 0.0
    %1444 = vmatprep.subr.mxu0 0.0
    %1445 = vmatpush2.msra.mxu0 0.0
    %1446 = vmatprep.subr.mxu0 0.0
    %1447 = vmatpush2.msra.mxu0 0.0
    %1448 = vmatprep.subr.mxu0 0.0
    %1449 = vmatpush2.msra.mxu0 0.0
    %1450 = vmatprep.subr.mxu0 0.0
    %1451 = vmatpush2.msra.mxu0 0.0
    %1452 = vmatprep.subr.mxu0 0.0
    %1453 = vmatpush2.msra.mxu0 0.0
    %1454 = vmatprep.subr.mxu0 0.0
    %1455 = vmatpush2.msra.mxu0 0.0
    %1456 = vmatprep.subr.mxu0 0.0
    %1457 = vmatpush2.msra.mxu0 0.0
    %1458 = vmatprep.subr.mxu0 0.0
    %1459 = vmatpush2.msra.mxu0 0.0
    %1460 = vmatprep.subr.mxu0 0.0
    %1461 = vmatpush2.msra.mxu0 0.0
    %1462 = vmatprep.subr.mxu0 0.0
    %1463 = vmatpush2.msra.mxu0 0.0
    %1464 = vmatprep.subr.mxu0 0.0
    %1465 = vmatpush2.msra.mxu0 0.0
    %1466 = vmatprep.subr.mxu0 0.0
    %1467 = vmatpush2.msra.mxu0 0.0
    %1468 = vmatprep.mubr.f32.mxu0 0.0
    %1469 = vmatmul.mubr.f32.gmra.mxu0 %v1402
    %v1470 = vpop.f32.mrf.mxu0
    %v1471 = vadd.f32 0.0, %v1470
    %v1472 = vpop.f32.mrf.mxu0
    %1473 = vdwg.mxu0
    %1474 = vrot.lane.b32.xlu0 %v387, 96
    %v1475 = vpop.permute.xlu0 %1474
    %v1478 = vsel %vm557, %v1397, 0
    %1480 = vmatprep.subr.mxu0 0.0
    %1481 = vmatpush1.msra.mxu0 0.0
    %1482 = vmatprep.subr.mxu0 0.0
    %1483 = vmatpush1.msra.mxu0 0.0
    %1484 = vmatprep.subr.mxu0 0.0
    %1485 = vmatpush1.msra.mxu0 0.0
    %1486 = vmatprep.subr.mxu0 0.0
    %1487 = vmatpush1.msra.mxu0 0.0
    %1488 = vmatprep.subr.mxu0 0.0
    %1489 = vmatpush1.msra.mxu0 0.0
    %1490 = vmatprep.subr.mxu0 0.0
    %1491 = vmatpush1.msra.mxu0 0.0
    %1492 = vmatprep.subr.mxu0 0.0
    %1493 = vmatpush1.msra.mxu0 0.0
    %1494 = vmatprep.subr.mxu0 0.0
    %1495 = vmatpush1.msra.mxu0 0.0
    %1496 = vmatprep.subr.mxu0 0.0
    %1497 = vmatpush1.msra.mxu0 0.0
    %1498 = vmatprep.subr.mxu0 0.0
    %1499 = vmatpush1.msra.mxu0 0.0
    %1500 = vmatprep.subr.mxu0 0.0
    %1501 = vmatpush1.msra.mxu0 0.0
    %1502 = vmatprep.subr.mxu0 0.0
    %1503 = vmatpush1.msra.mxu0 0.0
    %1504 = vmatprep.subr.mxu0 0.0
    %1505 = vmatpush1.msra.mxu0 0.0
    %1506 = vmatprep.subr.mxu0 0.0
    %1507 = vmatpush1.msra.mxu0 0.0
    %1508 = vmatprep.subr.mxu0 0.0
    %1509 = vmatpush1.msra.mxu0 0.0
    %1510 = vmatprep.subr.mxu0 0.0
    %1511 = vmatpush1.msra.mxu0 %v1475
    %1512 = vmatprep.subr.mxu0 0.0
    %1513 = vmatpush2.msra.mxu0 0.0
    %1514 = vmatprep.subr.mxu0 0.0
    %1515 = vmatpush2.msra.mxu0 0.0
    %1516 = vmatprep.subr.mxu0 0.0
    %1517 = vmatpush2.msra.mxu0 0.0
    %1518 = vmatprep.subr.mxu0 0.0
    %1519 = vmatpush2.msra.mxu0 0.0
    %1520 = vmatprep.subr.mxu0 0.0
    %1521 = vmatpush2.msra.mxu0 0.0
    %1522 = vmatprep.subr.mxu0 0.0
    %1523 = vmatpush2.msra.mxu0 0.0
    %1524 = vmatprep.subr.mxu0 0.0
    %1525 = vmatpush2.msra.mxu0 0.0
    %1526 = vmatprep.subr.mxu0 0.0
    %1527 = vmatpush2.msra.mxu0 0.0
    %1528 = vmatprep.subr.mxu0 0.0
    %1529 = vmatpush2.msra.mxu0 0.0
    %1530 = vmatprep.subr.mxu0 0.0
    %1531 = vmatpush2.msra.mxu0 0.0
    %1532 = vmatprep.subr.mxu0 0.0
    %1533 = vmatpush2.msra.mxu0 0.0
    %1534 = vmatprep.subr.mxu0 0.0
    %1535 = vmatpush2.msra.mxu0 0.0
    %1536 = vmatprep.subr.mxu0 0.0
    %1537 = vmatpush2.msra.mxu0 0.0
    %1538 = vmatprep.subr.mxu0 0.0
    %1539 = vmatpush2.msra.mxu0 0.0
    %1540 = vmatprep.subr.mxu0 0.0
    %1541 = vmatpush2.msra.mxu0 0.0
    %1542 = vmatprep.subr.mxu0 0.0
    %1543 = vmatpush2.msra.mxu0 0.0
    %1544 = vmatprep.mubr.f32.mxu0 0.0
    %1545 = vmatmul.mubr.f32.gmra.mxu0 %v1478
    %v1546 = vpop.f32.mrf.mxu0
    %v1547 = vadd.f32 0.0, %v1546
    %v1548 = vpop.f32.mrf.mxu0
    %1549 = vdwg.mxu0
    %v1551 = vsel %vm404, %v1471, 0
    %v1554 = vsel %vm404, %v1547, 0
    %1556 = vmatprep.subr.mxu0 0.0
    %1557 = vmatpush1.msra.mxu0 0.0
    %1558 = vmatprep.subr.mxu0 0.0
    %1559 = vmatpush1.msra.mxu0 0.0
    %1560 = vmatprep.subr.mxu0 0.0
    %1561 = vmatpush1.msra.mxu0 0.0
    %1562 = vmatprep.subr.mxu0 0.0
    %1563 = vmatpush1.msra.mxu0 0.0
    %1564 = vmatprep.subr.mxu0 0.0
    %1565 = vmatpush1.msra.mxu0 0.0
    %1566 = vmatprep.subr.mxu0 0.0
    %1567 = vmatpush1.msra.mxu0 0.0
    %1568 = vmatprep.subr.mxu0 0.0
    %1569 = vmatpush1.msra.mxu0 0.0
    %1570 = vmatprep.subr.mxu0 0.0
    %1571 = vmatpush1.msra.mxu0 0.0
    %1572 = vmatprep.subr.mxu0 0.0
    %1573 = vmatpush1.msra.mxu0 0.0
    %1574 = vmatprep.subr.mxu0 0.0
    %1575 = vmatpush1.msra.mxu0 0.0
    %1576 = vmatprep.subr.mxu0 0.0
    %1577 = vmatpush1.msra.mxu0 0.0
    %1578 = vmatprep.subr.mxu0 0.0
    %1579 = vmatpush1.msra.mxu0 0.0
    %1580 = vmatprep.subr.mxu0 0.0
    %1581 = vmatpush1.msra.mxu0 0.0
    %1582 = vmatprep.subr.mxu0 0.0
    %1583 = vmatpush1.msra.mxu0 0.0
    %1584 = vmatprep.subr.mxu0 0.0
    %1585 = vmatpush1.msra.mxu0 %v401
    %1586 = vmatprep.subr.mxu0 0.0
    %1587 = vmatpush1.msra.mxu0 %v400
    %1588 = vmatprep.subr.mxu0 0.0
    %1589 = vmatpush2.msra.mxu0 0.0
    %1590 = vmatprep.subr.mxu0 0.0
    %1591 = vmatpush2.msra.mxu0 0.0
    %1592 = vmatprep.subr.mxu0 0.0
    %1593 = vmatpush2.msra.mxu0 0.0
    %1594 = vmatprep.subr.mxu0 0.0
    %1595 = vmatpush2.msra.mxu0 0.0
    %1596 = vmatprep.subr.mxu0 0.0
    %1597 = vmatpush2.msra.mxu0 0.0
    %1598 = vmatprep.subr.mxu0 0.0
    %1599 = vmatpush2.msra.mxu0 0.0
    %1600 = vmatprep.subr.mxu0 0.0
    %1601 = vmatpush2.msra.mxu0 0.0
    %1602 = vmatprep.subr.mxu0 0.0
    %1603 = vmatpush2.msra.mxu0 0.0
    %1604 = vmatprep.subr.mxu0 0.0
    %1605 = vmatpush2.msra.mxu0 0.0
    %1606 = vmatprep.subr.mxu0 0.0
    %1607 = vmatpush2.msra.mxu0 0.0
    %1608 = vmatprep.subr.mxu0 0.0
    %1609 = vmatpush2.msra.mxu0 0.0
    %1610 = vmatprep.subr.mxu0 0.0
    %1611 = vmatpush2.msra.mxu0 0.0
    %1612 = vmatprep.subr.mxu0 0.0
    %1613 = vmatpush2.msra.mxu0 0.0
    %1614 = vmatprep.subr.mxu0 0.0
    %1615 = vmatpush2.msra.mxu0 0.0
    %1616 = vmatprep.subr.mxu0 0.0
    %1617 = vmatpush2.msra.mxu0 0.0
    %1618 = vmatprep.subr.mxu0 0.0
    %1619 = vmatpush2.msra.mxu0 0.0
    %1620 = vmatprep.mubr.f32.mxu0 0.0
    %1621 = vmatmul.mubr.f32.gmra.mxu0 %v1551
    %v1622 = vpop.f32.mrf.mxu0
    %v1623 = vadd.f32 0.0, %v1622
    %v1624 = vpop.f32.mrf.mxu0
    %1625 = vmatprep.mubr.f32.mxu0 0.0
    %1626 = vmatmul.mubr.f32.gmra.mxu0 %v1554
    %v1627 = vpop.f32.mrf.mxu0
    %v1628 = vadd.f32 0.0, %v1627
    %v1629 = vpop.f32.mrf.mxu0
    %1630 = vdwg.mxu0
    %v1631 = vadd.f32 %v1212, %v1623
    %v1632 = vadd.f32 %v1217, %v1628
    %1633 = vrot.lane.b32.xlu0 %v222, 80
    %v1634 = vpop.permute.xlu0 %1633
    %1635 = vrot.lane.b32.xlu0 %v299, 80
    %v1636 = vpop.permute.xlu0 %1635
    %v1637 = vsel %vm404, %v1634, 0
    %v1639 = vsel %vm404, %v1636, 0
    %1641 = vmatprep.subr.mxu0 0.0
    %1642 = vmatpush1.xpose.msra.mxu0 0.0
    %1643 = vmatprep.subr.mxu0 0.0
    %1644 = vmatpush1.xpose.msra.mxu0 0.0
    %1645 = vmatprep.subr.mxu0 0.0
    %1646 = vmatpush1.xpose.msra.mxu0 0.0
    %1647 = vmatprep.subr.mxu0 0.0
    %1648 = vmatpush1.xpose.msra.mxu0 0.0
    %1649 = vmatprep.subr.mxu0 0.0
    %1650 = vmatpush1.xpose.msra.mxu0 0.0
    %1651 = vmatprep.subr.mxu0 0.0
    %1652 = vmatpush1.xpose.msra.mxu0 0.0
    %1653 = vmatprep.subr.mxu0 0.0
    %1654 = vmatpush1.xpose.msra.mxu0 0.0
    %1655 = vmatprep.subr.mxu0 0.0
    %1656 = vmatpush1.xpose.msra.mxu0 0.0
    %1657 = vmatprep.subr.mxu0 0.0
    %1658 = vmatpush1.xpose.msra.mxu0 0.0
    %1659 = vmatprep.subr.mxu0 0.0
    %1660 = vmatpush1.xpose.msra.mxu0 0.0
    %1661 = vmatprep.subr.mxu0 0.0
    %1662 = vmatpush1.xpose.msra.mxu0 0.0
    %1663 = vmatprep.subr.mxu0 0.0
    %1664 = vmatpush1.xpose.msra.mxu0 0.0
    %1665 = vmatprep.subr.mxu0 0.0
    %1666 = vmatpush1.xpose.msra.mxu0 0.0
    %1667 = vmatprep.subr.mxu0 0.0
    %1668 = vmatpush1.xpose.msra.mxu0 0.0
    %1669 = vmatprep.subr.mxu0 0.0
    %1670 = vmatpush1.xpose.msra.mxu0 0.0
    %1671 = vmatprep.subr.mxu0 0.0
    %1672 = vmatpush1.xpose.msra.mxu0 %v1639
    %1673 = vmatprep.subr.mxu0 0.0
    %1674 = vmatpush2.xpose.msra.mxu0 0.0
    %1675 = vmatprep.subr.mxu0 0.0
    %1676 = vmatpush2.xpose.msra.mxu0 0.0
    %1677 = vmatprep.subr.mxu0 0.0
    %1678 = vmatpush2.xpose.msra.mxu0 0.0
    %1679 = vmatprep.subr.mxu0 0.0
    %1680 = vmatpush2.xpose.msra.mxu0 0.0
    %1681 = vmatprep.subr.mxu0 0.0
    %1682 = vmatpush2.xpose.msra.mxu0 0.0
    %1683 = vmatprep.subr.mxu0 0.0
    %1684 = vmatpush2.xpose.msra.mxu0 0.0
    %1685 = vmatprep.subr.mxu0 0.0
    %1686 = vmatpush2.xpose.msra.mxu0 0.0
    %1687 = vmatprep.subr.mxu0 0.0
    %1688 = vmatpush2.xpose.msra.mxu0 0.0
    %1689 = vmatprep.subr.mxu0 0.0
    %1690 = vmatpush2.xpose.msra.mxu0 0.0
    %1691 = vmatprep.subr.mxu0 0.0
    %1692 = vmatpush2.xpose.msra.mxu0 0.0
    %1693 = vmatprep.subr.mxu0 0.0
    %1694 = vmatpush2.xpose.msra.mxu0 0.0
    %1695 = vmatprep.subr.mxu0 0.0
    %1696 = vmatpush2.xpose.msra.mxu0 0.0
    %1697 = vmatprep.subr.mxu0 0.0
    %1698 = vmatpush2.xpose.msra.mxu0 0.0
    %1699 = vmatprep.subr.mxu0 0.0
    %1700 = vmatpush2.xpose.msra.mxu0 0.0
    %1701 = vmatprep.subr.mxu0 0.0
    %1702 = vmatpush2.xpose.msra.mxu0 0.0
    %1703 = vmatprep.subr.mxu0 0.0
    %1704 = vmatpush2.xpose.msra.mxu0 0.0
    %1705 = vmatprep.mubr.f32.mxu0 0.0
    %1706 = vmatmul.mubr.f32.gmra.mxu0 %v1637
    %v1707 = vpop.f32.mrf.mxu0
    %v1708 = vadd.f32 %v395, %v1707
    %v1709 = vpop.f32.mrf.mxu0
    %1710 = vdwg.mxu0
    %1711 = vrot.lane.b32.xlu0 %v223, 80
    %v1712 = vpop.permute.xlu0 %1711
    %1713 = vrot.lane.b32.xlu0 %v304, 80
    %v1714 = vpop.permute.xlu0 %1713
    %v1715 = vsel %vm404, %v1712, 0
    %v1717 = vsel %vm404, %v1714, 0
    %1719 = vmatprep.subr.mxu0 0.0
    %1720 = vmatpush1.xpose.msra.mxu0 0.0
    %1721 = vmatprep.subr.mxu0 0.0
    %1722 = vmatpush1.xpose.msra.mxu0 0.0
    %1723 = vmatprep.subr.mxu0 0.0
    %1724 = vmatpush1.xpose.msra.mxu0 0.0
    %1725 = vmatprep.subr.mxu0 0.0
    %1726 = vmatpush1.xpose.msra.mxu0 0.0
    %1727 = vmatprep.subr.mxu0 0.0
    %1728 = vmatpush1.xpose.msra.mxu0 0.0
    %1729 = vmatprep.subr.mxu0 0.0
    %1730 = vmatpush1.xpose.msra.mxu0 0.0
    %1731 = vmatprep.subr.mxu0 0.0
    %1732 = vmatpush1.xpose.msra.mxu0 0.0
    %1733 = vmatprep.subr.mxu0 0.0
    %1734 = vmatpush1.xpose.msra.mxu0 0.0
    %1735 = vmatprep.subr.mxu0 0.0
    %1736 = vmatpush1.xpose.msra.mxu0 0.0
    %1737 = vmatprep.subr.mxu0 0.0
    %1738 = vmatpush1.xpose.msra.mxu0 0.0
    %1739 = vmatprep.subr.mxu0 0.0
    %1740 = vmatpush1.xpose.msra.mxu0 0.0
    %1741 = vmatprep.subr.mxu0 0.0
    %1742 = vmatpush1.xpose.msra.mxu0 0.0
    %1743 = vmatprep.subr.mxu0 0.0
    %1744 = vmatpush1.xpose.msra.mxu0 0.0
    %1745 = vmatprep.subr.mxu0 0.0
    %1746 = vmatpush1.xpose.msra.mxu0 0.0
    %1747 = vmatprep.subr.mxu0 0.0
    %1748 = vmatpush1.xpose.msra.mxu0 0.0
    %1749 = vmatprep.subr.mxu0 0.0
    %1750 = vmatpush1.xpose.msra.mxu0 %v1717
    %1751 = vmatprep.subr.mxu0 0.0
    %1752 = vmatpush2.xpose.msra.mxu0 0.0
    %1753 = vmatprep.subr.mxu0 0.0
    %1754 = vmatpush2.xpose.msra.mxu0 0.0
    %1755 = vmatprep.subr.mxu0 0.0
    %1756 = vmatpush2.xpose.msra.mxu0 0.0
    %1757 = vmatprep.subr.mxu0 0.0
    %1758 = vmatpush2.xpose.msra.mxu0 0.0
    %1759 = vmatprep.subr.mxu0 0.0
    %1760 = vmatpush2.xpose.msra.mxu0 0.0
    %1761 = vmatprep.subr.mxu0 0.0
    %1762 = vmatpush2.xpose.msra.mxu0 0.0
    %1763 = vmatprep.subr.mxu0 0.0
    %1764 = vmatpush2.xpose.msra.mxu0 0.0
    %1765 = vmatprep.subr.mxu0 0.0
    %1766 = vmatpush2.xpose.msra.mxu0 0.0
    %1767 = vmatprep.subr.mxu0 0.0
    %1768 = vmatpush2.xpose.msra.mxu0 0.0
    %1769 = vmatprep.subr.mxu0 0.0
    %1770 = vmatpush2.xpose.msra.mxu0 0.0
    %1771 = vmatprep.subr.mxu0 0.0
    %1772 = vmatpush2.xpose.msra.mxu0 0.0
    %1773 = vmatprep.subr.mxu0 0.0
    %1774 = vmatpush2.xpose.msra.mxu0 0.0
    %1775 = vmatprep.subr.mxu0 0.0
    %1776 = vmatpush2.xpose.msra.mxu0 0.0
    %1777 = vmatprep.subr.mxu0 0.0
    %1778 = vmatpush2.xpose.msra.mxu0 0.0
    %1779 = vmatprep.subr.mxu0 0.0
    %1780 = vmatpush2.xpose.msra.mxu0 0.0
    %1781 = vmatprep.subr.mxu0 0.0
    %1782 = vmatpush2.xpose.msra.mxu0 0.0
    %1783 = vmatprep.mubr.f32.mxu0 0.0
    %1784 = vmatmul.mubr.f32.gmra.mxu0 %v1715
    %v1785 = vpop.f32.mrf.mxu0
    %v1786 = vadd.f32 %v395, %v1785
    %v1787 = vpop.f32.mrf.mxu0
    %1788 = vdwg.mxu0
    %v1789 = vsel %vm557, %v1708, -inf
    %1790 = vmax.xlane.f32.xlu0 %v1789
    %v1791 = vpop.xlane.xlu0 %1790
    %v1792 = vsel %vm557, %v1786, -inf
    %1793 = vmax.xlane.f32.xlu0 %v1792
    %v1794 = vpop.xlane.xlu0 %1793
    %v1795 = vsub.f32 %v1708, %v1791
    %v1796 = vsub.f32 %v1786, %v1794
    %v1797 = vmul.f32 %v1795, 1.442695
    %v1798 = vpow.pop %v1797
    %v1799 = vmul.f32 %v1796, 1.442695
    %v1800 = vpow.pop %v1799
    %v1801 = vsel %vm557, %v1798, 0.0
    %1802 = vadd.xlane.f32.xlu0 %v1801
    %v1803 = vpop.xlane.xlu0 %1802
    %v1804 = vsel %vm557, %v1800, 0.0
    %1805 = vadd.xlane.f32.xlu0 %v1804
    %v1806 = vpop.xlane.xlu0 %1805
    %v1807 = vrcp.pop %v1803
    %v1808 = vrcp.pop %v1806
    %v1809 = vmul.f32 %v1798, %v1807
    %v1810 = vmul.f32 %v1800, %v1808
    %1811 = vrot.lane.b32.xlu0 %v382, 80
    %v1812 = vpop.permute.xlu0 %1811
    %v1815 = vsel %vm557, %v1809, 0
    %1817 = vmatprep.subr.mxu0 0.0
    %1818 = vmatpush1.msra.mxu0 0.0
    %1819 = vmatprep.subr.mxu0 0.0
    %1820 = vmatpush1.msra.mxu0 0.0
    %1821 = vmatprep.subr.mxu0 0.0
    %1822 = vmatpush1.msra.mxu0 0.0
    %1823 = vmatprep.subr.mxu0 0.0
    %1824 = vmatpush1.msra.mxu0 0.0
    %1825 = vmatprep.subr.mxu0 0.0
    %1826 = vmatpush1.msra.mxu0 0.0
    %1827 = vmatprep.subr.mxu0 0.0
    %1828 = vmatpush1.msra.mxu0 0.0
    %1829 = vmatprep.subr.mxu0 0.0
    %1830 = vmatpush1.msra.mxu0 0.0
    %1831 = vmatprep.subr.mxu0 0.0
    %1832 = vmatpush1.msra.mxu0 0.0
    %1833 = vmatprep.subr.mxu0 0.0
    %1834 = vmatpush1.msra.mxu0 0.0
    %1835 = vmatprep.subr.mxu0 0.0
    %1836 = vmatpush1.msra.mxu0 0.0
    %1837 = vmatprep.subr.mxu0 0.0
    %1838 = vmatpush1.msra.mxu0 0.0
    %1839 = vmatprep.subr.mxu0 0.0
    %1840 = vmatpush1.msra.mxu0 0.0
    %1841 = vmatprep.subr.mxu0 0.0
    %1842 = vmatpush1.msra.mxu0 0.0
    %1843 = vmatprep.subr.mxu0 0.0
    %1844 = vmatpush1.msra.mxu0 0.0
    %1845 = vmatprep.subr.mxu0 0.0
    %1846 = vmatpush1.msra.mxu0 0.0
    %1847 = vmatprep.subr.mxu0 0.0
    %1848 = vmatpush1.msra.mxu0 %v1812
    %1849 = vmatprep.subr.mxu0 0.0
    %1850 = vmatpush2.msra.mxu0 0.0
    %1851 = vmatprep.subr.mxu0 0.0
    %1852 = vmatpush2.msra.mxu0 0.0
    %1853 = vmatprep.subr.mxu0 0.0
    %1854 = vmatpush2.msra.mxu0 0.0
    %1855 = vmatprep.subr.mxu0 0.0
    %1856 = vmatpush2.msra.mxu0 0.0
    %1857 = vmatprep.subr.mxu0 0.0
    %1858 = vmatpush2.msra.mxu0 0.0
    %1859 = vmatprep.subr.mxu0 0.0
    %1860 = vmatpush2.msra.mxu0 0.0
    %1861 = vmatprep.subr.mxu0 0.0
    %1862 = vmatpush2.msra.mxu0 0.0
    %1863 = vmatprep.subr.mxu0 0.0
    %1864 = vmatpush2.msra.mxu0 0.0
    %1865 = vmatprep.subr.mxu0 0.0
    %1866 = vmatpush2.msra.mxu0 0.0
    %1867 = vmatprep.subr.mxu0 0.0
    %1868 = vmatpush2.msra.mxu0 0.0
    %1869 = vmatprep.subr.mxu0 0.0
    %1870 = vmatpush2.msra.mxu0 0.0
    %1871 = vmatprep.subr.mxu0 0.0
    %1872 = vmatpush2.msra.mxu0 0.0
    %1873 = vmatprep.subr.mxu0 0.0
    %1874 = vmatpush2.msra.mxu0 0.0
    %1875 = vmatprep.subr.mxu0 0.0
    %1876 = vmatpush2.msra.mxu0 0.0
    %1877 = vmatprep.subr.mxu0 0.0
    %1878 = vmatpush2.msra.mxu0 0.0
    %1879 = vmatprep.subr.mxu0 0.0
    %1880 = vmatpush2.msra.mxu0 0.0
    %1881 = vmatprep.mubr.f32.mxu0 0.0
    %1882 = vmatmul.mubr.f32.gmra.mxu0 %v1815
    %v1883 = vpop.f32.mrf.mxu0
    %v1884 = vadd.f32 0.0, %v1883
    %v1885 = vpop.f32.mrf.mxu0
    %1886 = vdwg.mxu0
    %1887 = vrot.lane.b32.xlu0 %v387, 80
    %v1888 = vpop.permute.xlu0 %1887
    %v1891 = vsel %vm557, %v1810, 0
    %1893 = vmatprep.subr.mxu0 0.0
    %1894 = vmatpush1.msra.mxu0 0.0
    %1895 = vmatprep.subr.mxu0 0.0
    %1896 = vmatpush1.msra.mxu0 0.0
    %1897 = vmatprep.subr.mxu0 0.0
    %1898 = vmatpush1.msra.mxu0 0.0
    %1899 = vmatprep.subr.mxu0 0.0
    %1900 = vmatpush1.msra.mxu0 0.0
    %1901 = vmatprep.subr.mxu0 0.0
    %1902 = vmatpush1.msra.mxu0 0.0
    %1903 = vmatprep.subr.mxu0 0.0
    %1904 = vmatpush1.msra.mxu0 0.0
    %1905 = vmatprep.subr.mxu0 0.0
    %1906 = vmatpush1.msra.mxu0 0.0
    %1907 = vmatprep.subr.mxu0 0.0
    %1908 = vmatpush1.msra.mxu0 0.0
    %1909 = vmatprep.subr.mxu0 0.0
    %1910 = vmatpush1.msra.mxu0 0.0
    %1911 = vmatprep.subr.mxu0 0.0
    %1912 = vmatpush1.msra.mxu0 0.0
    %1913 = vmatprep.subr.mxu0 0.0
    %1914 = vmatpush1.msra.mxu0 0.0
    %1915 = vmatprep.subr.mxu0 0.0
    %1916 = vmatpush1.msra.mxu0 0.0
    %1917 = vmatprep.subr.mxu0 0.0
    %1918 = vmatpush1.msra.mxu0 0.0
    %1919 = vmatprep.subr.mxu0 0.0
    %1920 = vmatpush1.msra.mxu0 0.0
    %1921 = vmatprep.subr.mxu0 0.0
    %1922 = vmatpush1.msra.mxu0 0.0
    %1923 = vmatprep.subr.mxu0 0.0
    %1924 = vmatpush1.msra.mxu0 %v1888
    %1925 = vmatprep.subr.mxu0 0.0
    %1926 = vmatpush2.msra.mxu0 0.0
    %1927 = vmatprep.subr.mxu0 0.0
    %1928 = vmatpush2.msra.mxu0 0.0
    %1929 = vmatprep.subr.mxu0 0.0
    %1930 = vmatpush2.msra.mxu0 0.0
    %1931 = vmatprep.subr.mxu0 0.0
    %1932 = vmatpush2.msra.mxu0 0.0
    %1933 = vmatprep.subr.mxu0 0.0
    %1934 = vmatpush2.msra.mxu0 0.0
    %1935 = vmatprep.subr.mxu0 0.0
    %1936 = vmatpush2.msra.mxu0 0.0
    %1937 = vmatprep.subr.mxu0 0.0
    %1938 = vmatpush2.msra.mxu0 0.0
    %1939 = vmatprep.subr.mxu0 0.0
    %1940 = vmatpush2.msra.mxu0 0.0
    %1941 = vmatprep.subr.mxu0 0.0
    %1942 = vmatpush2.msra.mxu0 0.0
    %1943 = vmatprep.subr.mxu0 0.0
    %1944 = vmatpush2.msra.mxu0 0.0
    %1945 = vmatprep.subr.mxu0 0.0
    %1946 = vmatpush2.msra.mxu0 0.0
    %1947 = vmatprep.subr.mxu0 0.0
    %1948 = vmatpush2.msra.mxu0 0.0
    %1949 = vmatprep.subr.mxu0 0.0
    %1950 = vmatpush2.msra.mxu0 0.0
    %1951 = vmatprep.subr.mxu0 0.0
    %1952 = vmatpush2.msra.mxu0 0.0
    %1953 = vmatprep.subr.mxu0 0.0
    %1954 = vmatpush2.msra.mxu0 0.0
    %1955 = vmatprep.subr.mxu0 0.0
    %1956 = vmatpush2.msra.mxu0 0.0
    %1957 = vmatprep.mubr.f32.mxu0 0.0
    %1958 = vmatmul.mubr.f32.gmra.mxu0 %v1891
    %v1959 = vpop.f32.mrf.mxu0
    %v1960 = vadd.f32 0.0, %v1959
    %v1961 = vpop.f32.mrf.mxu0
    %1962 = vdwg.mxu0
    %v1964 = vsel %vm404, %v1884, 0
    %v1967 = vsel %vm404, %v1960, 0
    %1969 = vmatprep.subr.mxu0 0.0
    %1970 = vmatpush1.msra.mxu0 0.0
    %1971 = vmatprep.subr.mxu0 0.0
    %1972 = vmatpush1.msra.mxu0 0.0
    %1973 = vmatprep.subr.mxu0 0.0
    %1974 = vmatpush1.msra.mxu0 0.0
    %1975 = vmatprep.subr.mxu0 0.0
    %1976 = vmatpush1.msra.mxu0 0.0
    %1977 = vmatprep.subr.mxu0 0.0
    %1978 = vmatpush1.msra.mxu0 0.0
    %1979 = vmatprep.subr.mxu0 0.0
    %1980 = vmatpush1.msra.mxu0 0.0
    %1981 = vmatprep.subr.mxu0 0.0
    %1982 = vmatpush1.msra.mxu0 0.0
    %1983 = vmatprep.subr.mxu0 0.0
    %1984 = vmatpush1.msra.mxu0 0.0
    %1985 = vmatprep.subr.mxu0 0.0
    %1986 = vmatpush1.msra.mxu0 0.0
    %1987 = vmatprep.subr.mxu0 0.0
    %1988 = vmatpush1.msra.mxu0 0.0
    %1989 = vmatprep.subr.mxu0 0.0
    %1990 = vmatpush1.msra.mxu0 0.0
    %1991 = vmatprep.subr.mxu0 0.0
    %1992 = vmatpush1.msra.mxu0 0.0
    %1993 = vmatprep.subr.mxu0 0.0
    %1994 = vmatpush1.msra.mxu0 0.0
    %1995 = vmatprep.subr.mxu0 0.0
    %1996 = vmatpush1.msra.mxu0 0.0
    %1997 = vmatprep.subr.mxu0 0.0
    %1998 = vmatpush1.msra.mxu0 %v403
    %1999 = vmatprep.subr.mxu0 0.0
    %2000 = vmatpush1.msra.mxu0 %v402
    %2001 = vmatprep.subr.mxu0 0.0
    %2002 = vmatpush2.msra.mxu0 0.0
    %2003 = vmatprep.subr.mxu0 0.0
    %2004 = vmatpush2.msra.mxu0 0.0
    %2005 = vmatprep.subr.mxu0 0.0
    %2006 = vmatpush2.msra.mxu0 0.0
    %2007 = vmatprep.subr.mxu0 0.0
    %2008 = vmatpush2.msra.mxu0 0.0
    %2009 = vmatprep.subr.mxu0 0.0
    %2010 = vmatpush2.msra.mxu0 0.0
    %2011 = vmatprep.subr.mxu0 0.0
    %2012 = vmatpush2.msra.mxu0 0.0
    %2013 = vmatprep.subr.mxu0 0.0
    %2014 = vmatpush2.msra.mxu0 0.0
    %2015 = vmatprep.subr.mxu0 0.0
    %2016 = vmatpush2.msra.mxu0 0.0
    %2017 = vmatprep.subr.mxu0 0.0
    %2018 = vmatpush2.msra.mxu0 0.0
    %2019 = vmatprep.subr.mxu0 0.0
    %2020 = vmatpush2.msra.mxu0 0.0
    %2021 = vmatprep.subr.mxu0 0.0
    %2022 = vmatpush2.msra.mxu0 0.0
    %2023 = vmatprep.subr.mxu0 0.0
    %2024 = vmatpush2.msra.mxu0 0.0
    %2025 = vmatprep.subr.mxu0 0.0
    %2026 = vmatpush2.msra.mxu0 0.0
    %2027 = vmatprep.subr.mxu0 0.0
    %2028 = vmatpush2.msra.mxu0 0.0
    %2029 = vmatprep.subr.mxu0 0.0
    %2030 = vmatpush2.msra.mxu0 0.0
    %2031 = vmatprep.subr.mxu0 0.0
    %2032 = vmatpush2.msra.mxu0 0.0
    %2033 = vmatprep.mubr.f32.mxu0 0.0
    %2034 = vmatmul.mubr.f32.gmra.mxu0 %v1964
    %v2035 = vpop.f32.mrf.mxu0
    %v2036 = vadd.f32 0.0, %v2035
    %v2037 = vpop.f32.mrf.mxu0
    %2038 = vmatprep.mubr.f32.mxu0 0.0
    %2039 = vmatmul.mubr.f32.gmra.mxu0 %v1967
    %v2040 = vpop.f32.mrf.mxu0
    %v2041 = vadd.f32 0.0, %v2040
    %v2042 = vpop.f32.mrf.mxu0
    %2043 = vdwg.mxu0
    %v2044 = vadd.f32 %v1631, %v2036
    %v2045 = vadd.f32 %v1632, %v2041
    %v2046 = vadd.f32 %v85, %v2044
    %v2047 = vadd.f32 %v86, %v2045
    %v2048 = vld [vmem:[%s7] sm:$0x1]
    %v2050 = vlaneseq
    %v2051 = vshrl.u32 %v2050, 7
    %v2052 = vsub.s32 0, %v2051
    %v2053 = vrot.slane %v2048, %v2052
    %v2055 = vadd.f32 %v2046, %v2053
    %v2056 = vadd.f32 %v2047, %v2053
    %v2057 = vld [vmem:[%s8] sm:$0x1]
    %v2058 = vld [vmem:[%s9] sm:$0x1]
    %v2059 = vsel %vm89, %v2055, 0.0
    %2060 = vadd.xlane.f32.xlu0 %v2059
    %v2061 = vpop.xlane.xlu0 %2060
    %v2062 = vsel %vm89, %v2056, 0.0
    %2063 = vadd.xlane.f32.xlu0 %v2062
    %v2064 = vpop.xlane.xlu0 %2063
    %v2065 = vmul.f32 %v2061, %v96
    %v2066 = vmul.f32 %v2064, %v96
    %v2067 = vsub.f32 %v2055, %v2065
    %v2068 = vsub.f32 %v2056, %v2066
    %v2069 = vmul.f32 %v2067, %v2067
    %v2070 = vmul.f32 %v2068, %v2068
    %v2071 = vsel %vm89, %v2069, 0.0
    %2072 = vadd.xlane.f32.xlu0 %v2071
    %v2073 = vpop.xlane.xlu0 %2072
    %v2074 = vsel %vm89, %v2070, 0.0
    %2075 = vadd.xlane.f32.xlu0 %v2074
    %v2076 = vpop.xlane.xlu0 %2075
    %v2077 = vmul.f32 %v2073, %v96
    %v2078 = vmul.f32 %v2076, %v96
    %v2079 = vadd.f32 %v2077, 1e-05
    %v2080 = vadd.f32 %v2078, 1e-05
    %v2081 = vrsqrt.pop %v2079
    %v2082 = vrsqrt.pop %v2080
    %v2083 = vmul.f32 %v2067, %v2081
    %v2084 = vmul.f32 %v2068, %v2082
    %v2086 = vlaneseq
    %v2087 = vshrl.u32 %v2086, 7
    %v2088 = vsub.s32 0, %v2087
    %v2089 = vrot.slane %v2057, %v2088
    %v2091 = vmul.f32 %v2083, %v2089
    %v2092 = vmul.f32 %v2084, %v2089
    %v2094 = vlaneseq
    %v2095 = vshrl.u32 %v2094, 7
    %v2096 = vsub.s32 0, %v2095
    %v2097 = vrot.slane %v2058, %v2096
    %v2099 = vadd.f32 %v2091, %v2097
    %v2100 = vadd.f32 %v2092, %v2097
    %v2101 = vld [vmem:[%s10] sm:$0xff]
    %v2102 = vld [vmem:[%s10 + $0x8] sm:$0xff]
    %v2103 = vld [vmem:[%s10 + $0x10] sm:$0xff]
    %v2104 = vld [vmem:[%s10 + $0x18] sm:$0xff]
    %v2105 = vld [vmem:[%s10 + $0x20] sm:$0xff]
    %v2106 = vld [vmem:[%s10 + $0x28] sm:$0xff]
    %v2107 = vld [vmem:[%s10 + $0x30] sm:$0xff]
    %v2108 = vld [vmem:[%s10 + $0x38] sm:$0xff]
    %v2109 = vld [vmem:[%s10 + $0x40] sm:$0xff]
    %v2110 = vld [vmem:[%s10 + $0x48] sm:$0xff]
    %v2111 = vld [vmem:[%s10 + $0x50] sm:$0xff]
    %v2112 = vld [vmem:[%s10 + $0x58] sm:$0xff]
    %v2113 = vld [vmem:[%s10 + $0x60] sm:$0xff]
    %v2114 = vld [vmem:[%s10 + $0x68] sm:$0xff]
    %v2115 = vld [vmem:[%s10 + $0x70] sm:$0xff]
    %v2116 = vld [vmem:[%s10 + $0x78] sm:$0xff]
    %v2117 = vld [vmem:[%s11] sm:$0x3]
    %v2119 = vlaneseq
    %v2120 = vshrl.u32 %v2119, 7
    %v2121 = vsub.s32 0, %v2120
    %v2122 = vrot.slane %v2117, %v2121
    %v2123 = vlaneseq
    %v2124 = vshrl.u32 %v2123, 7
    %v2125 = vsub.s32 1, %v2124
    %v2126 = vrot.slane %v2117, %v2125
    %v2130 = vsel %vm89, %v2099, 0
    %v2133 = vsel %vm89, %v2100, 0
    %2135 = vmatprep.subr.mxu0 0.0
    %2136 = vmatpush1.msra.mxu0 0.0
    %2137 = vmatprep.subr.mxu0 0.0
    %2138 = vmatpush1.msra.mxu0 0.0
    %2139 = vmatprep.subr.mxu0 0.0
    %2140 = vmatpush1.msra.mxu0 0.0
    %2141 = vmatprep.subr.mxu0 0.0
    %2142 = vmatpush1.msra.mxu0 0.0
    %2143 = vmatprep.subr.mxu0 0.0
    %2144 = vmatpush1.msra.mxu0 0.0
    %2145 = vmatprep.subr.mxu0 0.0
    %2146 = vmatpush1.msra.mxu0 0.0
    %2147 = vmatprep.subr.mxu0 0.0
    %2148 = vmatpush1.msra.mxu0 0.0
    %2149 = vmatprep.subr.mxu0 0.0
    %2150 = vmatpush1.msra.mxu0 0.0
    %2151 = vmatprep.subr.mxu0 %v2116
    %2152 = vmatpush1.msra.mxu0 %v2115
    %2153 = vmatprep.subr.mxu0 %v2114
    %2154 = vmatpush1.msra.mxu0 %v2113
    %2155 = vmatprep.subr.mxu0 %v2112
    %2156 = vmatpush1.msra.mxu0 %v2111
    %2157 = vmatprep.subr.mxu0 %v2110
    %2158 = vmatpush1.msra.mxu0 %v2109
    %2159 = vmatprep.subr.mxu0 %v2108
    %2160 = vmatpush1.msra.mxu0 %v2107
    %2161 = vmatprep.subr.mxu0 %v2106
    %2162 = vmatpush1.msra.mxu0 %v2105
    %2163 = vmatprep.subr.mxu0 %v2104
    %2164 = vmatpush1.msra.mxu0 %v2103
    %2165 = vmatprep.subr.mxu0 %v2102
    %2166 = vmatpush1.msra.mxu0 %v2101
    %2167 = vmatprep.subr.mxu0 0.0
    %2168 = vmatpush2.msra.mxu0 0.0
    %2169 = vmatprep.subr.mxu0 0.0
    %2170 = vmatpush2.msra.mxu0 0.0
    %2171 = vmatprep.subr.mxu0 0.0
    %2172 = vmatpush2.msra.mxu0 0.0
    %2173 = vmatprep.subr.mxu0 0.0
    %2174 = vmatpush2.msra.mxu0 0.0
    %2175 = vmatprep.subr.mxu0 0.0
    %2176 = vmatpush2.msra.mxu0 0.0
    %2177 = vmatprep.subr.mxu0 0.0
    %2178 = vmatpush2.msra.mxu0 0.0
    %2179 = vmatprep.subr.mxu0 0.0
    %2180 = vmatpush2.msra.mxu0 0.0
    %2181 = vmatprep.subr.mxu0 0.0
    %2182 = vmatpush2.msra.mxu0 0.0
    %2183 = vmatprep.subr.mxu0 0.0
    %2184 = vmatpush2.msra.mxu0 0.0
    %2185 = vmatprep.subr.mxu0 0.0
    %2186 = vmatpush2.msra.mxu0 0.0
    %2187 = vmatprep.subr.mxu0 0.0
    %2188 = vmatpush2.msra.mxu0 0.0
    %2189 = vmatprep.subr.mxu0 0.0
    %2190 = vmatpush2.msra.mxu0 0.0
    %2191 = vmatprep.subr.mxu0 0.0
    %2192 = vmatpush2.msra.mxu0 0.0
    %2193 = vmatprep.subr.mxu0 0.0
    %2194 = vmatpush2.msra.mxu0 0.0
    %2195 = vmatprep.subr.mxu0 0.0
    %2196 = vmatpush2.msra.mxu0 0.0
    %2197 = vmatprep.subr.mxu0 0.0
    %2198 = vmatpush2.msra.mxu0 0.0
    %2199 = vmatprep.mubr.f32.mxu0 0.0
    %2200 = vmatmul.mubr.f32.gmra.mxu0 %v2130
    %v2201 = vpop.f32.mrf.mxu0
    %v2202 = vadd.f32 %v2122, %v2201
    %v2203 = vpop.f32.mrf.mxu0
    %v2204 = vadd.f32 %v2126, %v2203
    %2205 = vmatprep.mubr.f32.mxu0 0.0
    %2206 = vmatmul.mubr.f32.gmra.mxu0 %v2133
    %v2207 = vpop.f32.mrf.mxu0
    %v2208 = vadd.f32 %v2122, %v2207
    %v2209 = vpop.f32.mrf.mxu0
    %v2210 = vadd.f32 %v2126, %v2209
    %2211 = vdwg.mxu0
    %v2212 = vmax.f32 %v2202, 0.0
    %v2213 = vmax.f32 %v2204, 0.0
    %v2214 = vmax.f32 %v2208, 0.0
    %v2215 = vmax.f32 %v2210, 0.0
    %v2216 = vld [vmem:[%s12] sm:$0xff]
    %v2217 = vld [vmem:[%s12 + $0x8] sm:$0xff]
    %v2218 = vld [vmem:[%s12 + $0x10] sm:$0xff]
    %v2219 = vld [vmem:[%s12 + $0x18] sm:$0xff]
    %v2220 = vld [vmem:[%s12 + $0x20] sm:$0xff]
    %v2221 = vld [vmem:[%s12 + $0x28] sm:$0xff]
    %v2222 = vld [vmem:[%s12 + $0x30] sm:$0xff]
    %v2223 = vld [vmem:[%s12 + $0x38] sm:$0xff]
    %v2224 = vld [vmem:[%s12 + $0x40] sm:$0xff]
    %v2225 = vld [vmem:[%s12 + $0x48] sm:$0xff]
    %v2226 = vld [vmem:[%s12 + $0x50] sm:$0xff]
    %v2227 = vld [vmem:[%s12 + $0x58] sm:$0xff]
    %v2228 = vld [vmem:[%s12 + $0x60] sm:$0xff]
    %v2229 = vld [vmem:[%s12 + $0x68] sm:$0xff]
    %v2230 = vld [vmem:[%s12 + $0x70] sm:$0xff]
    %v2231 = vld [vmem:[%s12 + $0x78] sm:$0xff]
    %v2232 = vld [vmem:[%s12 + $0x80] sm:$0xff]
    %v2233 = vld [vmem:[%s12 + $0x88] sm:$0xff]
    %v2234 = vld [vmem:[%s12 + $0x90] sm:$0xff]
    %v2235 = vld [vmem:[%s12 + $0x98] sm:$0xff]
    %v2236 = vld [vmem:[%s12 + $0xa0] sm:$0xff]
    %v2237 = vld [vmem:[%s12 + $0xa8] sm:$0xff]
    %v2238 = vld [vmem:[%s12 + $0xb0] sm:$0xff]
    %v2239 = vld [vmem:[%s12 + $0xb8] sm:$0xff]
    %v2240 = vld [vmem:[%s12 + $0xc0] sm:$0xff]
    %v2241 = vld [vmem:[%s12 + $0xc8] sm:$0xff]
    %v2242 = vld [vmem:[%s12 + $0xd0] sm:$0xff]
    %v2243 = vld [vmem:[%s12 + $0xd8] sm:$0xff]
    %v2244 = vld [vmem:[%s12 + $0xe0] sm:$0xff]
    %v2245 = vld [vmem:[%s12 + $0xe8] sm:$0xff]
    %v2246 = vld [vmem:[%s12 + $0xf0] sm:$0xff]
    %v2247 = vld [vmem:[%s12 + $0xf8] sm:$0xff]
    %v2248 = vld [vmem:[%s13] sm:$0x1]
    %v2250 = vlaneseq
    %v2251 = vshrl.u32 %v2250, 7
    %v2252 = vsub.s32 0, %v2251
    %v2253 = vrot.slane %v2248, %v2252
    %2255 = vmatprep.subr.mxu0 0.0
    %2256 = vmatpush1.msra.mxu0 %v2231
    %2257 = vmatprep.subr.mxu0 0.0
    %2258 = vmatpush1.msra.mxu0 %v2230
    %2259 = vmatprep.subr.mxu0 0.0
    %2260 = vmatpush1.msra.mxu0 %v2229
    %2261 = vmatprep.subr.mxu0 0.0
    %2262 = vmatpush1.msra.mxu0 %v2228
    %2263 = vmatprep.subr.mxu0 0.0
    %2264 = vmatpush1.msra.mxu0 %v2227
    %2265 = vmatprep.subr.mxu0 0.0
    %2266 = vmatpush1.msra.mxu0 %v2226
    %2267 = vmatprep.subr.mxu0 0.0
    %2268 = vmatpush1.msra.mxu0 %v2225
    %2269 = vmatprep.subr.mxu0 0.0
    %2270 = vmatpush1.msra.mxu0 %v2224
    %2271 = vmatprep.subr.mxu0 0.0
    %2272 = vmatpush1.msra.mxu0 %v2223
    %2273 = vmatprep.subr.mxu0 0.0
    %2274 = vmatpush1.msra.mxu0 %v2222
    %2275 = vmatprep.subr.mxu0 0.0
    %2276 = vmatpush1.msra.mxu0 %v2221
    %2277 = vmatprep.subr.mxu0 0.0
    %2278 = vmatpush1.msra.mxu0 %v2220
    %2279 = vmatprep.subr.mxu0 0.0
    %2280 = vmatpush1.msra.mxu0 %v2219
    %2281 = vmatprep.subr.mxu0 0.0
    %2282 = vmatpush1.msra.mxu0 %v2218
    %2283 = vmatprep.subr.mxu0 0.0
    %2284 = vmatpush1.msra.mxu0 %v2217
    %2285 = vmatprep.subr.mxu0 0.0
    %2286 = vmatpush1.msra.mxu0 %v2216
    %2287 = vmatprep.subr.mxu0 0.0
    %2288 = vmatpush2.msra.mxu0 %v2247
    %2289 = vmatprep.subr.mxu0 0.0
    %2290 = vmatpush2.msra.mxu0 %v2246
    %2291 = vmatprep.subr.mxu0 0.0
    %2292 = vmatpush2.msra.mxu0 %v2245
    %2293 = vmatprep.subr.mxu0 0.0
    %2294 = vmatpush2.msra.mxu0 %v2244
    %2295 = vmatprep.subr.mxu0 0.0
    %2296 = vmatpush2.msra.mxu0 %v2243
    %2297 = vmatprep.subr.mxu0 0.0
    %2298 = vmatpush2.msra.mxu0 %v2242
    %2299 = vmatprep.subr.mxu0 0.0
    %2300 = vmatpush2.msra.mxu0 %v2241
    %2301 = vmatprep.subr.mxu0 0.0
    %2302 = vmatpush2.msra.mxu0 %v2240
    %2303 = vmatprep.subr.mxu0 0.0
    %2304 = vmatpush2.msra.mxu0 %v2239
    %2305 = vmatprep.subr.mxu0 0.0
    %2306 = vmatpush2.msra.mxu0 %v2238
    %2307 = vmatprep.subr.mxu0 0.0
    %2308 = vmatpush2.msra.mxu0 %v2237
    %2309 = vmatprep.subr.mxu0 0.0
    %2310 = vmatpush2.msra.mxu0 %v2236
    %2311 = vmatprep.subr.mxu0 0.0
    %2312 = vmatpush2.msra.mxu0 %v2235
    %2313 = vmatprep.subr.mxu0 0.0
    %2314 = vmatpush2.msra.mxu0 %v2234
    %2315 = vmatprep.subr.mxu0 0.0
    %2316 = vmatpush2.msra.mxu0 %v2233
    %2317 = vmatprep.subr.mxu0 0.0
    %2318 = vmatpush2.msra.mxu0 %v2232
    %2319 = vmatprep.mubr.f32.mxu0 %v2213
    %2320 = vmatmul.mubr.f32.gmra.mxu0 %v2212
    %v2321 = vpop.f32.mrf.mxu0
    %v2322 = vadd.f32 %v2253, %v2321
    %v2323 = vpop.f32.mrf.mxu0
    %2324 = vmatprep.mubr.f32.mxu0 %v2215
    %2325 = vmatmul.mubr.f32.gmra.mxu0 %v2214
    %v2326 = vpop.f32.mrf.mxu0
    %v2327 = vadd.f32 %v2253, %v2326
    %v2328 = vpop.f32.mrf.mxu0
    %2329 = vdwg.mxu0
    %v2330 = vadd.f32 %v2055, %v2322
    %v2331 = vadd.f32 %v2056, %v2327
    %2332 = vst.msk [vmem:[#allocation8] sm:$0xff] %vm89, %v2330
    %2333 = vst.msk [vmem:[#allocation8 + $0x8] sm:$0xff] %vm89, %v2331
    // Predicated region
    $region70: #{tpu_custom_call.1} parent=1 // pred_check
      _
    $region71: #{tpu_custom_call.1} parent=1 // pred_check_branch
      %2335 = sbr.rel (0) target = $region73
    $region72: #{tpu_custom_call.1} parent=1 // pred_region
      %s2337 = ssub.s32 256, 256
      %2338 = vsyncadd [#allocation4], %s2337
      %s2339 = sshll.u32 [#allocation8], 4
      %s2340 = int_to_ptr.vmem [resolvable:$true] %s2339
      %2345 = dma.vmem_to_hbm [thread:$0]  %s2340, 256, %s14, [#allocation4], 128, 128, 8
    $region73: #{tpu_custom_call.1} parent=1 // pred_fallthru
      _
    // Predicated region
    $region74: #{tpu_custom_call.1} parent=1 // pred_check
      _
    $region75: #{tpu_custom_call.1} parent=1 // pred_check_branch
      %2347 = sbr.rel (0) target = $region77
    $region76: #{tpu_custom_call.1} parent=1 // pred_region
      %2348 = dma.done [#allocation4], 256
    $region77: #{tpu_custom_call.1} parent=1 // pred_fallthru
      _
    %2349 = vsyncpa [#allocation3], 1
    %2350 = vsyncpa [#allocation6], 1
    %2351 = vsyncpa [#allocation4], 1

</llo_original>
